<compile_context>
chip_gen: v5e
topology: v5e:2x2
jax: 0.10.0
libtpu: 0.0.40
codegen_flags: <defaults>
</compile_context>

<pallas_src>
import functools
import math

import jax
import jax.numpy as jnp
from jax.experimental import pallas as pl
from jax.experimental.pallas import tpu as pltpu


def _default_vmem_limit():
    # v5e/v6e: 128 MiB physical -> ~96 MiB scoped window; v7x: 64 MiB -> ~48 MiB.
    try:
        cap = pltpu.get_tpu_info().vmem_capacity_bytes
    except Exception:
        cap = 64 * 1024 * 1024  # conservative fallback (v7x physical size)
    return int(min(96 * 1024 * 1024, cap * 3 // 4))


_VMEM_LIMIT = _default_vmem_limit()


def _pick_tile(dim, target, align):
    """Largest tile <= target that is a multiple of `align` and divides `dim`.

    Falls back to the full dimension (full-extent blocks are always legal)."""
    if dim <= target:
        return dim
    t = (target // align) * align
    while t >= align:
        if dim % t == 0:
            return t
        t -= align
    return dim


def _head_group_size(nH, dH):
    """Smallest #heads per attention grid step whose fused column width is
    lane-aligned (multiple of 128); falls back to all heads for tiny models."""
    for hg in range(1, nH + 1):
        if nH % hg == 0 and (hg * dH) % 128 == 0:
            return hg
    return nH


# ----------------------------- Pallas kernels ------------------------------

def _matmul_kernel(x_ref, w_ref, b_ref, o_ref, acc_ref, *, activation):
    """Tiled matmul: o = act(x @ w + b).  bf16 operands, f32 accumulation."""
    @pl.when(pl.program_id(2) == 0)
    def _():
        acc_ref[...] = jnp.zeros_like(acc_ref)

    acc_ref[...] += jnp.dot(x_ref[...], w_ref[...],
                            preferred_element_type=jnp.float32)

    @pl.when(pl.program_id(2) == pl.num_programs(2) - 1)
    def _():
        y = acc_ref[...] + b_ref[...]
        if activation == "gelu":
            y = jax.nn.gelu(y, approximate=True)   # tanh-GELU -> EUP
        o_ref[...] = y.astype(o_ref.dtype)


def _matmul_res_ln_kernel(x_ref, w_ref, b_ref, res_ref, g_ref, beta_ref,
                          o_ref, acc_ref, *, eps):
    """Tiled matmul fused with residual add + LayerNorm epilogue (f32 math)."""
    @pl.when(pl.program_id(1) == 0)
    def _():
        acc_ref[...] = jnp.zeros_like(acc_ref)

    acc_ref[...] += jnp.dot(x_ref[...], w_ref[...],
                            preferred_element_type=jnp.float32)

    @pl.when(pl.program_id(1) == pl.num_programs(1) - 1)
    def _():
        y = acc_ref[...] + b_ref[...] + res_ref[...].astype(jnp.float32)
        mu = jnp.mean(y, axis=-1, keepdims=True)
        var = jnp.mean(jnp.square(y - mu), axis=-1, keepdims=True)
        o_ref[...] = ((y - mu) * jax.lax.rsqrt(var + eps) * g_ref[...]
                      + beta_ref[...]).astype(o_ref.dtype)


def _layernorm_kernel(x_ref, g_ref, b_ref, o_ref, *, eps):
    x = x_ref[...].astype(jnp.float32)
    mu = jnp.mean(x, axis=-1, keepdims=True)
    var = jnp.mean(jnp.square(x - mu), axis=-1, keepdims=True)
    o_ref[...] = ((x - mu) * jax.lax.rsqrt(var + eps) * g_ref[...]
                  + b_ref[...]).astype(o_ref.dtype)


def _attention_kernel(qkv_ref, m_ref, o_ref, *, heads_per_group, dH, scale):
    # qkv_ref: (S, 3*GW) bf16, one (batch, head-group); columns laid out
    #          [Q_group | K_group | V_group] with heads contiguous inside.
    # m_ref:   (1, S) f32 additive key mask for this batch.
    # o_ref:   (S, GW) bf16 lane-dense context for this head group.
    GW = heads_per_group * dH
    mask = m_ref[...]                                  # (1, S) f32
    qkv = qkv_ref[...]                                 # (S, 3*GW) bf16
    ctx_cols = []
    for h in range(heads_per_group):                   # tiny unroll (<=2 typical)
        # scale folded into q (bf16) before the MXU matmul
        q = qkv[:, h * dH:(h + 1) * dH] * scale
        k = qkv[:, GW + h * dH: GW + (h + 1) * dH]
        v = qkv[:, 2 * GW + h * dH: 2 * GW + (h + 1) * dH]
        # contract dH of both operands directly -> no k.T transpose on the XLU
        s = jax.lax.dot_general(q, k, (((1,), (1,)), ((), ())),
                                preferred_element_type=jnp.float32)
        s = s + mask                                   # f32 mask / softmax math
        s = s - jnp.max(s, axis=-1, keepdims=True)
        p = jnp.exp(s)
        p = p * pl.reciprocal(jnp.sum(p, axis=-1, keepdims=True), approx=True)
        ctx_cols.append(jnp.dot(p.astype(v.dtype), v,
                                preferred_element_type=jnp.float32))
    out = ctx_cols[0] if len(ctx_cols) == 1 else jnp.concatenate(ctx_cols, -1)
    o_ref[...] = out.astype(o_ref.dtype)               # single lane-dense store


# ------------------------------- wrappers -----------------------------------

def matmul(x, w, b, activation=None, out_dtype=jnp.bfloat16,
           tm=512, tn=512, tk=512):
    M, K = x.shape
    N = w.shape[1]
    tm = _pick_tile(M, tm, 16)     # 16-row alignment for bf16 sublane packing
    tn = _pick_tile(N, tn, 128)
    tk = _pick_tile(K, tk, 128)
    gm, gn, gk = M // tm, N // tn, K // tk
    kern = functools.partial(_matmul_kernel, activation=activation)
    cost = pl.CostEstimate(
        flops=2 * M * N * K,
        transcendentals=(M * N if activation == "gelu" else 0),
        bytes_accessed=(M * K * x.dtype.itemsize) * gn       # X streamed per N tile
        + (K * N * w.dtype.itemsize) * gm                    # W streamed per M tile
        + N * 4 + M * N * jnp.dtype(out_dtype).itemsize)
    return pl.pallas_call(
        kern,
        out_shape=jax.ShapeDtypeStruct((M, N), out_dtype),
        grid=(gm, gn, gk),
        in_specs=[
            pl.BlockSpec((tm, tk), lambda i, j, k: (i, k)),
            pl.BlockSpec((tk, tn), lambda i, j, k: (k, j)),
            pl.BlockSpec((1, tn), lambda i, j, k: (0, j)),
        ],
        out_specs=pl.BlockSpec((tm, tn), lambda i, j, k: (i, j)),
        scratch_shapes=[pltpu.VMEM((tm, tn), jnp.float32)],
        compiler_params=pltpu.CompilerParams(
            dimension_semantics=("parallel", "parallel", "arbitrary"),
            vmem_limit_bytes=_VMEM_LIMIT),
        cost_estimate=cost,
    )(x, w, b.reshape(1, N))


def matmul_residual_layernorm(x, w, b, res, g, beta, eps=1e-12, tm=512, tk=512):
    """o = LayerNorm(x @ w + b + res).  N (= hidden) kept whole for the LN."""
    M, K = x.shape
    N = w.shape[1]
    tm = _pick_tile(M, tm, 16)
    tk = _pick_tile(K, tk, 128)

    # VMEM audit (double-buffered bf16 blocks + f32 accumulator); keep the
    # working set comfortably inside the scoped window (tight on v7x: 64 MiB).
    def _ws(tm_, tk_):
        return (2 * tm_ * tk_ * 2      # x blocks
                + 2 * tk_ * N * 2      # w blocks
                + 4 * tm_ * N * 2      # res + out blocks
                + tm_ * N * 4          # f32 accumulator
                + 6 * N * 4)           # bias/gamma/beta
    for _ in range(6):
        if _ws(tm, tk) <= _VMEM_LIMIT // 2 or tm <= 16:
            break
        nt = _pick_tile(M, max(16, tm // 2), 16)
        if nt >= tm:
            break
        tm = nt

    gm, gk = M // tm, K // tk
    kern = functools.partial(_matmul_res_ln_kernel, eps=eps)
    cost = pl.CostEstimate(
        flops=2 * M * N * K,
        transcendentals=M,
        bytes_accessed=M * K * x.dtype.itemsize
        + (K * N * w.dtype.itemsize) * gm
        + res.size * res.dtype.itemsize + M * N * 2 + 3 * N * 4)
    return pl.pallas_call(
        kern,
        out_shape=jax.ShapeDtypeStruct((M, N), jnp.bfloat16),
        grid=(gm, gk),
        in_specs=[
            pl.BlockSpec((tm, tk), lambda i, k: (i, k)),
            pl.BlockSpec((tk, N), lambda i, k: (k, 0)),
            pl.BlockSpec((1, N), lambda i, k: (0, 0)),
            pl.BlockSpec((tm, N), lambda i, k: (i, 0)),
            pl.BlockSpec((1, N), lambda i, k: (0, 0)),
            pl.BlockSpec((1, N), lambda i, k: (0, 0)),
        ],
        out_specs=pl.BlockSpec((tm, N), lambda i, k: (i, 0)),
        scratch_shapes=[pltpu.VMEM((tm, N), jnp.float32)],
        compiler_params=pltpu.CompilerParams(
            dimension_semantics=("parallel", "arbitrary"),
            vmem_limit_bytes=_VMEM_LIMIT),
        cost_estimate=cost,
    )(x, w, b.reshape(1, N), res, g.reshape(1, N), beta.reshape(1, N))


def layernorm(x, g, b, eps, out_dtype=jnp.bfloat16, tm=512):
    M, H = x.shape
    tm = _pick_tile(M, tm, 16)
    if M // tm < 2 and M >= 32:          # keep >=2 parallel steps for v7x 2-TC
        tm = _pick_tile(M, max(16, tm // 2), 16)
    kern = functools.partial(_layernorm_kernel, eps=eps)
    return pl.pallas_call(
        kern,
        out_shape=jax.ShapeDtypeStruct((M, H), out_dtype),
        grid=(M // tm,),
        in_specs=[
            pl.BlockSpec((tm, H), lambda i: (i, 0)),
            pl.BlockSpec((1, H), lambda i: (0, 0)),
            pl.BlockSpec((1, H), lambda i: (0, 0)),
        ],
        out_specs=pl.BlockSpec((tm, H), lambda i: (i, 0)),
        compiler_params=pltpu.CompilerParams(
            dimension_semantics=("parallel",),
            vmem_limit_bytes=_VMEM_LIMIT),
    )(x, g.reshape(1, H), b.reshape(1, H))


def multi_head_attention(qkv, add_mask, *, B, S, nH, dH, hg):
    # qkv: (B*S, 3H) bf16 fused projections laid out per head-group
    #      [Q_g | K_g | V_g]; add_mask: (B, 1, S) f32 additive key mask.
    H = nH * dH
    GW = hg * dH
    nG = nH // hg
    qkv3 = qkv.reshape(B, S, 3 * H)            # free row-major reshape
    kern = functools.partial(_attention_kernel, heads_per_group=hg, dH=dH,
                             scale=1.0 / math.sqrt(dH))
    ctx = pl.pallas_call(
        kern,
        out_shape=jax.ShapeDtypeStruct((B, S, H), jnp.bfloat16),
        grid=(B, nG),
        in_specs=[
            pl.BlockSpec((None, S, 3 * GW), lambda b, g: (b, 0, g)),
            pl.BlockSpec((None, 1, S), lambda b, g: (b, 0, 0)),
        ],
        out_specs=pl.BlockSpec((None, S, GW), lambda b, g: (b, 0, g)),
        compiler_params=pltpu.CompilerParams(
            dimension_semantics=("parallel", "parallel"),
            vmem_limit_bytes=_VMEM_LIMIT),
    )(qkv3, add_mask)
    return ctx.reshape(B * S, H)


# ----------------------------- model definition -----------------------------

def _group_qkv_columns(wq, wk, wv, nH, dH, hg):
    """Re-layout fused QKV weight columns: per head-group g -> [Q_g | K_g | V_g]
    (each hg*dH wide, heads contiguous inside the group)."""
    GW = hg * dH
    blocks = []
    for gi in range(nH // hg):
        sl = slice(gi * GW, (gi + 1) * GW)
        blocks += [wq[:, sl], wk[:, sl], wv[:, sl]]
    return jnp.concatenate(blocks, axis=1)


def init_params(key, *, vocab, max_pos, H, nH, FFN, L, C):
    dH = H // nH
    hg = _head_group_size(nH, dH)

    def nrm(k, shape, dtype=jnp.bfloat16):
        return (0.02 * jax.random.normal(k, shape, dtype=jnp.float32)).astype(dtype)

    keys = jax.random.split(key, 4 + 8 * L)
    p = {
        # bf16 embedding tables: halves the gather/add HBM traffic
        "word_emb": nrm(keys[0], (vocab, H)),
        "pos_emb": nrm(keys[1], (max_pos, H)),
        "type_emb": nrm(keys[2], (2, H)),
        "emb_ln_g": jnp.ones((H,), jnp.float32),
        "emb_ln_b": jnp.zeros((H,), jnp.float32),
        "layers": [],
        # classifier head (nn.LayerNorm + nn.Linear from the PyTorch module)
        "norm_g": jnp.ones((H,), jnp.float32),
        "norm_b": jnp.zeros((H,), jnp.float32),
        "decode_w": nrm(keys[3], (H, C)),
        "decode_b": jnp.zeros((C,), jnp.float32),
    }
    ki = 4
    for _ in range(L):
        wq = nrm(keys[ki + 0], (H, H))
        wk = nrm(keys[ki + 1], (H, H))
        wv = nrm(keys[ki + 2], (H, H))
        layer = {
            # fused Q/K/V projection with per-head-group column layout
            "w_qkv": _group_qkv_columns(wq, wk, wv, nH, dH, hg),
            "b_qkv": jnp.zeros((3 * H,), jnp.float32),
            "wo": nrm(keys[ki + 3], (H, H)), "bo": jnp.zeros((H,), jnp.float32),
            "ln1_g": jnp.ones((H,), jnp.float32), "ln1_b": jnp.zeros((H,), jnp.float32),
            "w1": nrm(keys[ki + 4], (H, FFN)), "b1": jnp.zeros((FFN,), jnp.float32),
            "w2": nrm(keys[ki + 5], (FFN, H)), "b2": jnp.zeros((H,), jnp.float32),
            "ln2_g": jnp.ones((H,), jnp.float32), "ln2_b": jnp.zeros((H,), jnp.float32),
        }
        p["layers"].append(layer)
        ki += 8
    return p


def transformer_classifier_forward(params, input_ids, attn_mask, *, nH):
    B, S = input_ids.shape
    H = params["word_emb"].shape[1]
    dH = H // nH
    hg = _head_group_size(nH, dH)

    # --- embeddings (bf16 gathers are XLA glue; LN is Pallas) ---
    we = params["word_emb"][input_ids]                    # (B, S, H) bf16
    pe = params["pos_emb"][jnp.arange(S)]                 # (S, H)
    te = params["type_emb"][0]                            # (H,)
    emb = (we + pe[None, :, :] + te[None, None, :]).reshape(B * S, H)
    h = layernorm(emb, params["emb_ln_g"], params["emb_ln_b"], eps=1e-12)  # bf16

    if attn_mask is None:
        attn_mask = jnp.ones((B, S), jnp.float32)
    add_mask = ((1.0 - attn_mask.astype(jnp.float32)) * -1e9)[:, None, :]  # (B,1,S)
    # TODO(synk): only keys are masked (additive); padded query rows are left
    #             untouched -- CLS logits are unaffected, matching the head.

    for layer in params["layers"]:
        # --- self attention (fused QKV -> attention -> fused o-proj+Add&LN) ---
        qkv = matmul(h, layer["w_qkv"], layer["b_qkv"])                      # (B*S, 3H)
        ctx = multi_head_attention(qkv, add_mask, B=B, S=S, nH=nH, dH=dH, hg=hg)
        h = matmul_residual_layernorm(ctx, layer["wo"], layer["bo"], h,
                                      layer["ln1_g"], layer["ln1_b"], eps=1e-12)

        # --- feed forward (up+GELU, then fused down+Add&LN, K-tiled over FFN) ---
        ff = matmul(h, layer["w1"], layer["b1"], activation="gelu")          # (B*S, FFN)
        h = matmul_residual_layernorm(ff, layer["w2"], layer["b2"], h,
                                      layer["ln2_g"], layer["ln2_b"], eps=1e-12)

    # --- classifier head: CLS token -> LayerNorm -> Linear ---
    cls = h.reshape(B, S, H)[:, 0, :]                                        # (B, H)
    cls = layernorm(cls, params["norm_g"], params["norm_b"], eps=1e-5)
    logits = matmul(cls, params["decode_w"], params["decode_b"],
                    out_dtype=jnp.float32)                                   # (B, C)
    return logits


# --------------------------------- main --------------------------------------

if __name__ == "__main__":
    B, S, H, nH, FFN, L = 2, 8, 32, 2, 64, 2
    VOCAB, MAX_POS, CLASS_NUM = 100, 64, 4

    key = jax.random.PRNGKey(0)
    k_param, k_ids = jax.random.split(key)

    params = init_params(k_param, vocab=VOCAB, max_pos=MAX_POS, H=H,
                         nH=nH, FFN=FFN, L=L, C=CLASS_NUM)

    input_ids = jax.random.randint(k_ids, (B, S), 0, VOCAB, dtype=jnp.int32)
    attn_mask = jnp.ones((B, S), jnp.float32).at[1, S - 2:].set(0.0)  # pad tail of batch 1

    fwd = jax.jit(functools.partial(transformer_classifier_forward, nH=nH))
    logits = fwd(params, input_ids, attn_mask)
    logits = jax.block_until_ready(logits)

    assert logits.shape == (B, CLASS_NUM), logits.shape
    assert bool(jnp.all(jnp.isfinite(logits)))
    print("KERNEL_OK")
</pallas_src>

<mosaic_0001>
module attributes {stable_mosaic.version = 11 : i64} {
  func.func @_layernorm_kernel(%arg0: i32, %arg1: memref<16x32xbf16, #tpu.memory_space<vmem>>, %arg2: memref<1x32xf32, #tpu.memory_space<vmem>>, %arg3: memref<1x32xf32, #tpu.memory_space<vmem>>, %arg4: memref<16x32xbf16, #tpu.memory_space<vmem>>) attributes {dimension_semantics = [#tpu.dimension_semantics<parallel>], iteration_bounds = array<i64: 1>, scalar_prefetch = 0 : i64, scratch_operands = 0 : i64, tpu.core_type = #tpu.core_type<tc>, window_params = [{transform_indices = @transform_0, window_bounds = array<i64: 16, 32>}, {pipeline_mode = #tpu.pipeline_mode<synchronous>, transform_indices = @transform_1, window_bounds = array<i64: 1, 32>}, {pipeline_mode = #tpu.pipeline_mode<synchronous>, transform_indices = @transform_2, window_bounds = array<i64: 1, 32>}, {transform_indices = @transform_3, window_bounds = array<i64: 16, 32>}]} {
    %c0 = arith.constant 0 : index
    %c0_0 = arith.constant 0 : index
    %0 = vector.load %arg1[%c0, %c0_0] : memref<16x32xbf16, #tpu.memory_space<vmem>>, vector<16x32xbf16>
    %1 = arith.extf %0 : vector<16x32xbf16> to vector<16x32xf32>
    %cst = arith.constant dense<0.000000e+00> : vector<16xf32>
    %2 = vector.multi_reduction <add>, %1, %cst [1] : vector<16x32xf32> to vector<16xf32>
    %3 = vector.shape_cast %2 : vector<16xf32> to vector<16x1xf32>
    %cst_1 = arith.constant 3.200000e+01 : f32
    %4 = vector.broadcast %cst_1 : f32 to vector<16x1xf32>
    %5 = arith.divf %3, %4 : vector<16x1xf32>
    %6 = vector.broadcast %5 : vector<16x1xf32> to vector<16x32xf32>
    %7 = arith.subf %1, %6 : vector<16x32xf32>
    %8 = arith.mulf %7, %7 : vector<16x32xf32>
    %cst_2 = arith.constant dense<0.000000e+00> : vector<16xf32>
    %9 = vector.multi_reduction <add>, %8, %cst_2 [1] : vector<16x32xf32> to vector<16xf32>
    %10 = vector.shape_cast %9 : vector<16xf32> to vector<16x1xf32>
    %cst_3 = arith.constant 3.200000e+01 : f32
    %11 = vector.broadcast %cst_3 : f32 to vector<16x1xf32>
    %12 = arith.divf %10, %11 : vector<16x1xf32>
    %13 = vector.broadcast %5 : vector<16x1xf32> to vector<16x32xf32>
    %14 = arith.subf %1, %13 : vector<16x32xf32>
    %cst_4 = arith.constant 9.99999996E-13 : f32
    %15 = vector.broadcast %cst_4 : f32 to vector<16x1xf32>
    %16 = arith.addf %12, %15 : vector<16x1xf32>
    %17 = math.rsqrt %16 : vector<16x1xf32>
    %18 = vector.broadcast %17 : vector<16x1xf32> to vector<16x32xf32>
    %19 = arith.mulf %14, %18 : vector<16x32xf32>
    %c0_5 = arith.constant 0 : index
    %c0_6 = arith.constant 0 : index
    %20 = vector.load %arg2[%c0_5, %c0_6] : memref<1x32xf32, #tpu.memory_space<vmem>>, vector<1x32xf32>
    %21 = vector.broadcast %20 : vector<1x32xf32> to vector<16x32xf32>
    %22 = arith.mulf %19, %21 : vector<16x32xf32>
    %c0_7 = arith.constant 0 : index
    %c0_8 = arith.constant 0 : index
    %23 = vector.load %arg3[%c0_7, %c0_8] : memref<1x32xf32, #tpu.memory_space<vmem>>, vector<1x32xf32>
    %24 = vector.broadcast %23 : vector<1x32xf32> to vector<16x32xf32>
    %25 = arith.addf %22, %24 : vector<16x32xf32>
    %26 = arith.truncf %25 : vector<16x32xf32> to vector<16x32xbf16>
    %c0_9 = arith.constant 0 : index
    %c0_10 = arith.constant 0 : index
    %27 = vector.load %arg4[%c0_9, %c0_10] : memref<16x32xbf16, #tpu.memory_space<vmem>>, vector<16x32xbf16>
    tpu.vector_store %arg4[%c0_9, %c0_10], %26 {strides = array<i32>} : memref<16x32xbf16, #tpu.memory_space<vmem>>, vector<16x32xbf16>,
    return
  }
  func.func @transform_0(%arg0: i32) -> (i32, i32) {
    %c0_i32 = arith.constant 0 : i32
    %c0_i32_0 = arith.constant 0 : i32
    return %arg0, %c0_i32 : i32, i32
  }
  func.func @transform_1(%arg0: i32) -> (i32, i32) {
    %c0_i32 = arith.constant 0 : i32
    %c0_i32_0 = arith.constant 0 : i32
    %c0_i32_1 = arith.constant 0 : i32
    return %c0_i32, %c0_i32_0 : i32, i32
  }
  func.func @transform_2(%arg0: i32) -> (i32, i32) {
    %c0_i32 = arith.constant 0 : i32
    %c0_i32_0 = arith.constant 0 : i32
    %c0_i32_1 = arith.constant 0 : i32
    return %c0_i32, %c0_i32_0 : i32, i32
  }
  func.func @transform_3(%arg0: i32) -> (i32, i32) {
    %c0_i32 = arith.constant 0 : i32
    %c0_i32_0 = arith.constant 0 : i32
    return %arg0, %c0_i32 : i32, i32
  }
}

module attributes {stable_mosaic.version = 11 : i64} {
  func.func @_matmul_res_ln_kernel(%arg0: i32, %arg1: i32, %arg2: memref<16x32xbf16, #tpu.memory_space<vmem>>, %arg3: memref<32x32xbf16, #tpu.memory_space<vmem>>, %arg4: memref<1x32xf32, #tpu.memory_space<vmem>>, %arg5: memref<16x32xbf16, #tpu.memory_space<vmem>>, %arg6: memref<1x32xf32, #tpu.memory_space<vmem>>, %arg7: memref<1x32xf32, #tpu.memory_space<vmem>>, %arg8: memref<16x32xbf16, #tpu.memory_space<vmem>>, %arg9: memref<16x32xf32, #tpu.memory_space<vmem>>) attributes {dimension_semantics = [#tpu.dimension_semantics<parallel>, #tpu.dimension_semantics<arbitrary>], iteration_bounds = array<i64: 1, 1>, scalar_prefetch = 0 : i64, scratch_operands = 1 : i64, tpu.core_type = #tpu.core_type<tc>, window_params = [{transform_indices = @transform_0, window_bounds = array<i64: 16, 32>}, {transform_indices = @transform_1, window_bounds = array<i64: 32, 32>}, {pipeline_mode = #tpu.pipeline_mode<synchronous>, transform_indices = @transform_2, window_bounds = array<i64: 1, 32>}, {transform_indices = @transform_3, window_bounds = array<i64: 16, 32>}, {pipeline_mode = #tpu.pipeline_mode<synchronous>, transform_indices = @transform_4, window_bounds = array<i64: 1, 32>}, {pipeline_mode = #tpu.pipeline_mode<synchronous>, transform_indices = @transform_5, window_bounds = array<i64: 1, 32>}, {transform_indices = @transform_6, window_bounds = array<i64: 16, 32>}]} {
    %c0_i32 = arith.constant 0 : i32
    %0 = arith.cmpi eq, %arg1, %c0_i32 : i32
    %1 = arith.extui %0 : i1 to i32
    %c0_i32_0 = arith.constant 0 : i32
    %2 = arith.cmpi ne, %1, %c0_i32_0 : i32
    scf.if %2 {
      %cst_10 = arith.constant 0.000000e+00 : f32
      %12 = vector.broadcast %cst_10 : f32 to vector<16x32xf32>
      %c0_11 = arith.constant 0 : index
      %c0_12 = arith.constant 0 : index
      %13 = vector.load %arg9[%c0_11, %c0_12] : memref<16x32xf32, #tpu.memory_space<vmem>>, vector<16x32xf32>
      tpu.vector_store %arg9[%c0_11, %c0_12], %12 {strides = array<i32>} : memref<16x32xf32, #tpu.memory_space<vmem>>, vector<16x32xf32>,
    } else {
    }
    %c0 = arith.constant 0 : index
    %c0_1 = arith.constant 0 : index
    %3 = vector.load %arg9[%c0, %c0_1] : memref<16x32xf32, #tpu.memory_space<vmem>>, vector<16x32xf32>
    %c0_2 = arith.constant 0 : index
    %c0_3 = arith.constant 0 : index
    %4 = vector.load %arg2[%c0_2, %c0_3] : memref<16x32xbf16, #tpu.memory_space<vmem>>, vector<16x32xbf16>
    %c0_4 = arith.constant 0 : index
    %c0_5 = arith.constant 0 : index
    %5 = vector.load %arg3[%c0_4, %c0_5] : memref<32x32xbf16, #tpu.memory_space<vmem>>, vector<32x32xbf16>
    %cst = arith.constant dense<0.000000e+00> : vector<16x32xf32>
    %6 = tpu.matmul %4, %5, %cst {dimension_numbers = #tpu.dot_dimension_numbers<[1], [0], [0], [1], [0, 0, 1, 1], [], []>} : vector<16x32xbf16>, vector<32x32xbf16>, vector<16x32xf32> -> vector<16x32xf32>
    %7 = arith.addf %3, %6 : vector<16x32xf32>
    %c0_6 = arith.constant 0 : index
    %c0_7 = arith.constant 0 : index
    %8 = vector.load %arg9[%c0_6, %c0_7] : memref<16x32xf32, #tpu.memory_space<vmem>>, vector<16x32xf32>
    tpu.vector_store %arg9[%c0_6, %c0_7], %7 {strides = array<i32>} : memref<16x32xf32, #tpu.memory_space<vmem>>, vector<16x32xf32>,
    %c0_i32_8 = arith.constant 0 : i32
    %9 = arith.cmpi eq, %arg1, %c0_i32_8 : i32
    %10 = arith.extui %9 : i1 to i32
    %c0_i32_9 = arith.constant 0 : i32
    %11 = arith.cmpi ne, %10, %c0_i32_9 : i32
    scf.if %11 {
      %c0_10 = arith.constant 0 : index
      %c0_11 = arith.constant 0 : index
      %12 = vector.load %arg9[%c0_10, %c0_11] : memref<16x32xf32, #tpu.memory_space<vmem>>, vector<16x32xf32>
      %c0_12 = arith.constant 0 : index
      %c0_13 = arith.constant 0 : index
      %13 = vector.load %arg4[%c0_12, %c0_13] : memref<1x32xf32, #tpu.memory_space<vmem>>, vector<1x32xf32>
      %14 = vector.broadcast %13 : vector<1x32xf32> to vector<16x32xf32>
      %15 = arith.addf %12, %14 : vector<16x32xf32>
      %c0_14 = arith.constant 0 : index
      %c0_15 = arith.constant 0 : index
      %16 = vector.load %arg5[%c0_14, %c0_15] : memref<16x32xbf16, #tpu.memory_space<vmem>>, vector<16x32xbf16>
      %17 = arith.extf %16 : vector<16x32xbf16> to vector<16x32xf32>
      %18 = arith.addf %15, %17 : vector<16x32xf32>
      %cst_16 = arith.constant dense<0.000000e+00> : vector<16xf32>
      %19 = vector.multi_reduction <add>, %18, %cst_16 [1] : vector<16x32xf32> to vector<16xf32>
      %20 = vector.shape_cast %19 : vector<16xf32> to vector<16x1xf32>
      %cst_17 = arith.constant 3.200000e+01 : f32
      %21 = vector.broadcast %cst_17 : f32 to vector<16x1xf32>
      %22 = arith.divf %20, %21 : vector<16x1xf32>
      %23 = vector.broadcast %22 : vector<16x1xf32> to vector<16x32xf32>
      %24 = arith.subf %18, %23 : vector<16x32xf32>
      %25 = arith.mulf %24, %24 : vector<16x32xf32>
      %cst_18 = arith.constant dense<0.000000e+00> : vector<16xf32>
      %26 = vector.multi_reduction <add>, %25, %cst_18 [1] : vector<16x32xf32> to vector<16xf32>
      %27 = vector.shape_cast %26 : vector<16xf32> to vector<16x1xf32>
      %cst_19 = arith.constant 3.200000e+01 : f32
      %28 = vector.broadcast %cst_19 : f32 to vector<16x1xf32>
      %29 = arith.divf %27, %28 : vector<16x1xf32>
      %30 = vector.broadcast %22 : vector<16x1xf32> to vector<16x32xf32>
      %31 = arith.subf %18, %30 : vector<16x32xf32>
      %cst_20 = arith.constant 9.99999996E-13 : f32
      %32 = vector.broadcast %cst_20 : f32 to vector<16x1xf32>
      %33 = arith.addf %29, %32 : vector<16x1xf32>
      %34 = math.rsqrt %33 : vector<16x1xf32>
      %35 = vector.broadcast %34 : vector<16x1xf32> to vector<16x32xf32>
      %36 = arith.mulf %31, %35 : vector<16x32xf32>
      %c0_21 = arith.constant 0 : index
      %c0_22 = arith.constant 0 : index
      %37 = vector.load %arg6[%c0_21, %c0_22] : memref<1x32xf32, #tpu.memory_space<vmem>>, vector<1x32xf32>
      %38 = vector.broadcast %37 : vector<1x32xf32> to vector<16x32xf32>
      %39 = arith.mulf %36, %38 : vector<16x32xf32>
      %c0_23 = arith.constant 0 : index
      %c0_24 = arith.constant 0 : index
      %40 = vector.load %arg7[%c0_23, %c0_24] : memref<1x32xf32, #tpu.memory_space<vmem>>, vector<1x32xf32>
      %41 = vector.broadcast %40 : vector<1x32xf32> to vector<16x32xf32>
      %42 = arith.addf %39, %41 : vector<16x32xf32>
      %43 = arith.truncf %42 : vector<16x32xf32> to vector<16x32xbf16>
      %c0_25 = arith.constant 0 : index
      %c0_26 = arith.constant 0 : index
      %44 = vector.load %arg8[%c0_25, %c0_26] : memref<16x32xbf16, #tpu.memory_space<vmem>>, vector<16x32xbf16>
      tpu.vector_store %arg8[%c0_25, %c0_26], %43 {strides = array<i32>} : memref<16x32xbf16, #tpu.memory_space<vmem>>, vector<16x32xbf16>,
    } else {
    }
    return
  }
  func.func @transform_0(%arg0: i32, %arg1: i32) -> (i32, i32) {
    %c0_i32 = arith.constant 0 : i32
    return %arg0, %arg1 : i32, i32
  }
  func.func @transform_1(%arg0: i32, %arg1: i32) -> (i32, i32) {
    %c0_i32 = arith.constant 0 : i32
    %c0_i32_0 = arith.constant 0 : i32
    return %arg1, %c0_i32 : i32, i32
  }
  func.func @transform_2(%arg0: i32, %arg1: i32) -> (i32, i32) {
    %c0_i32 = arith.constant 0 : i32
    %c0_i32_0 = arith.constant 0 : i32
    %c0_i32_1 = arith.constant 0 : i32
    return %c0_i32, %c0_i32_0 : i32, i32
  }
  func.func @transform_3(%arg0: i32, %arg1: i32) -> (i32, i32) {
    %c0_i32 = arith.constant 0 : i32
    %c0_i32_0 = arith.constant 0 : i32
    return %arg0, %c0_i32 : i32, i32
  }
  func.func @transform_4(%arg0: i32, %arg1: i32) -> (i32, i32) {
    %c0_i32 = arith.constant 0 : i32
    %c0_i32_0 = arith.constant 0 : i32
    %c0_i32_1 = arith.constant 0 : i32
    return %c0_i32, %c0_i32_0 : i32, i32
  }
  func.func @transform_5(%arg0: i32, %arg1: i32) -> (i32, i32) {
    %c0_i32 = arith.constant 0 : i32
    %c0_i32_0 = arith.constant 0 : i32
    %c0_i32_1 = arith.constant 0 : i32
    return %c0_i32, %c0_i32_0 : i32, i32
  }
  func.func @transform_6(%arg0: i32, %arg1: i32) -> (i32, i32) {
    %c0_i32 = arith.constant 0 : i32
    %c0_i32_0 = arith.constant 0 : i32
    return %arg0, %c0_i32 : i32, i32
  }
}

module attributes {stable_mosaic.version = 11 : i64} {
  func.func @_matmul_kernel(%arg0: i32, %arg1: i32, %arg2: i32, %arg3: memref<16x32xbf16, #tpu.memory_space<vmem>>, %arg4: memref<32x96xbf16, #tpu.memory_space<vmem>>, %arg5: memref<1x96xf32, #tpu.memory_space<vmem>>, %arg6: memref<16x96xbf16, #tpu.memory_space<vmem>>, %arg7: memref<16x96xf32, #tpu.memory_space<vmem>>) attributes {dimension_semantics = [#tpu.dimension_semantics<parallel>, #tpu.dimension_semantics<parallel>, #tpu.dimension_semantics<arbitrary>], iteration_bounds = array<i64: 1, 1, 1>, scalar_prefetch = 0 : i64, scratch_operands = 1 : i64, tpu.core_type = #tpu.core_type<tc>, window_params = [{transform_indices = @transform_0, window_bounds = array<i64: 16, 32>}, {transform_indices = @transform_1, window_bounds = array<i64: 32, 96>}, {transform_indices = @transform_2, window_bounds = array<i64: 1, 96>}, {transform_indices = @transform_3, window_bounds = array<i64: 16, 96>}]} {
    %c0_i32 = arith.constant 0 : i32
    %0 = arith.cmpi eq, %arg2, %c0_i32 : i32
    %1 = arith.extui %0 : i1 to i32
    %c0_i32_0 = arith.constant 0 : i32
    %2 = arith.cmpi ne, %1, %c0_i32_0 : i32
    scf.if %2 {
      %cst_10 = arith.constant 0.000000e+00 : f32
      %12 = vector.broadcast %cst_10 : f32 to vector<16x96xf32>
      %c0_11 = arith.constant 0 : index
      %c0_12 = arith.constant 0 : index
      %13 = vector.load %arg7[%c0_11, %c0_12] : memref<16x96xf32, #tpu.memory_space<vmem>>, vector<16x96xf32>
      tpu.vector_store %arg7[%c0_11, %c0_12], %12 {strides = array<i32>} : memref<16x96xf32, #tpu.memory_space<vmem>>, vector<16x96xf32>,
    } else {
    }
    %c0 = arith.constant 0 : index
    %c0_1 = arith.constant 0 : index
    %3 = vector.load %arg7[%c0, %c0_1] : memref<16x96xf32, #tpu.memory_space<vmem>>, vector<16x96xf32>
    %c0_2 = arith.constant 0 : index
    %c0_3 = arith.constant 0 : index
    %4 = vector.load %arg3[%c0_2, %c0_3] : memref<16x32xbf16, #tpu.memory_space<vmem>>, vector<16x32xbf16>
    %c0_4 = arith.constant 0 : index
    %c0_5 = arith.constant 0 : index
    %5 = vector.load %arg4[%c0_4, %c0_5] : memref<32x96xbf16, #tpu.memory_space<vmem>>, vector<32x96xbf16>
    %cst = arith.constant dense<0.000000e+00> : vector<16x96xf32>
    %6 = tpu.matmul %4, %5, %cst {dimension_numbers = #tpu.dot_dimension_numbers<[1], [0], [0], [1], [0, 0, 1, 1], [], []>} : vector<16x32xbf16>, vector<32x96xbf16>, vector<16x96xf32> -> vector<16x96xf32>
    %7 = arith.addf %3, %6 : vector<16x96xf32>
    %c0_6 = arith.constant 0 : index
    %c0_7 = arith.constant 0 : index
    %8 = vector.load %arg7[%c0_6, %c0_7] : memref<16x96xf32, #tpu.memory_space<vmem>>, vector<16x96xf32>
    tpu.vector_store %arg7[%c0_6, %c0_7], %7 {strides = array<i32>} : memref<16x96xf32, #tpu.memory_space<vmem>>, vector<16x96xf32>,
    %c0_i32_8 = arith.constant 0 : i32
    %9 = arith.cmpi eq, %arg2, %c0_i32_8 : i32
    %10 = arith.extui %9 : i1 to i32
    %c0_i32_9 = arith.constant 0 : i32
    %11 = arith.cmpi ne, %10, %c0_i32_9 : i32
    scf.if %11 {
      %c0_10 = arith.constant 0 : index
      %c0_11 = arith.constant 0 : index
      %12 = vector.load %arg7[%c0_10, %c0_11] : memref<16x96xf32, #tpu.memory_space<vmem>>, vector<16x96xf32>
      %c0_12 = arith.constant 0 : index
      %c0_13 = arith.constant 0 : index
      %13 = vector.load %arg5[%c0_12, %c0_13] : memref<1x96xf32, #tpu.memory_space<vmem>>, vector<1x96xf32>
      %14 = vector.broadcast %13 : vector<1x96xf32> to vector<16x96xf32>
      %15 = arith.addf %12, %14 : vector<16x96xf32>
      %16 = arith.truncf %15 : vector<16x96xf32> to vector<16x96xbf16>
      %c0_14 = arith.constant 0 : index
      %c0_15 = arith.constant 0 : index
      %17 = vector.load %arg6[%c0_14, %c0_15] : memref<16x96xbf16, #tpu.memory_space<vmem>>, vector<16x96xbf16>
      tpu.vector_store %arg6[%c0_14, %c0_15], %16 {strides = array<i32>} : memref<16x96xbf16, #tpu.memory_space<vmem>>, vector<16x96xbf16>,
    } else {
    }
    return
  }
  func.func @transform_0(%arg0: i32, %arg1: i32, %arg2: i32) -> (i32, i32) {
    %c0_i32 = arith.constant 0 : i32
    return %arg0, %arg2 : i32, i32
  }
  func.func @transform_1(%arg0: i32, %arg1: i32, %arg2: i32) -> (i32, i32) {
    %c0_i32 = arith.constant 0 : i32
    return %arg2, %arg1 : i32, i32
  }
  func.func @transform_2(%arg0: i32, %arg1: i32, %arg2: i32) -> (i32, i32) {
    %c0_i32 = arith.constant 0 : i32
    %c0_i32_0 = arith.constant 0 : i32
    return %c0_i32, %arg1 : i32, i32
  }
  func.func @transform_3(%arg0: i32, %arg1: i32, %arg2: i32) -> (i32, i32) {
    %c0_i32 = arith.constant 0 : i32
    return %arg0, %arg1 : i32, i32
  }
}

module attributes {stable_mosaic.version = 11 : i64} {
  func.func @_attention_kernel(%arg0: i32, %arg1: i32, %arg2: memref<1x8x96xbf16, #tpu.memory_space<vmem>>, %arg3: memref<1x1x8xf32, #tpu.memory_space<vmem>>, %arg4: memref<1x8x32xbf16, #tpu.memory_space<vmem>>) attributes {dimension_semantics = [#tpu.dimension_semantics<parallel>, #tpu.dimension_semantics<parallel>], iteration_bounds = array<i64: 2, 1>, scalar_prefetch = 0 : i64, scratch_operands = 0 : i64, tpu.core_type = #tpu.core_type<tc>, window_params = [{transform_indices = @transform_0, window_bounds = array<i64: 1, 8, 96>}, {transform_indices = @transform_1, window_bounds = array<i64: 1, 1, 8>}, {transform_indices = @transform_2, window_bounds = array<i64: 1, 8, 32>}]} {
    %c0 = arith.constant 0 : index
    %c0_0 = arith.constant 0 : index
    %c0_1 = arith.constant 0 : index
    %0 = vector.load %arg3[%c0, %c0_0, %c0_1] : memref<1x1x8xf32, #tpu.memory_space<vmem>>, vector<1x1x8xf32>
    %1 = vector.shape_cast %0 : vector<1x1x8xf32> to vector<1x8xf32>
    %c0_2 = arith.constant 0 : index
    %c0_3 = arith.constant 0 : index
    %c0_4 = arith.constant 0 : index
    %2 = vector.load %arg2[%c0_2, %c0_3, %c0_4] : memref<1x8x96xbf16, #tpu.memory_space<vmem>>, vector<1x8x96xbf16>
    %3 = vector.shape_cast %2 : vector<1x8x96xbf16> to vector<8x96xbf16>
    %4 = vector.extract_strided_slice %3 {offsets = [0, 0], sizes = [8, 16], strides = [1, 1]} : vector<8x96xbf16> to vector<8x16xbf16>
    %cst = arith.constant 2.500000e-01 : bf16
    %5 = vector.broadcast %cst : bf16 to vector<8x16xbf16>
    %6 = arith.mulf %4, %5 : vector<8x16xbf16>
    %7 = vector.extract_strided_slice %3 {offsets = [0, 32], sizes = [8, 16], strides = [1, 1]} : vector<8x96xbf16> to vector<8x16xbf16>
    %8 = vector.extract_strided_slice %3 {offsets = [0, 64], sizes = [8, 16], strides = [1, 1]} : vector<8x96xbf16> to vector<8x16xbf16>
    %cst_5 = arith.constant dense<0.000000e+00> : vector<8x8xf32>
    %9 = tpu.matmul %6, %7, %cst_5 {dimension_numbers = #tpu.dot_dimension_numbers<[1], [1], [0], [0], [0, 0, 1, 0], [], []>} : vector<8x16xbf16>, vector<8x16xbf16>, vector<8x8xf32> -> vector<8x8xf32>
    %10 = vector.broadcast %1 : vector<1x8xf32> to vector<8x8xf32>
    %11 = arith.addf %9, %10 : vector<8x8xf32>
    %cst_6 = arith.constant dense<0xFF800000> : vector<8xf32>
    %12 = vector.multi_reduction <maximumf>, %11, %cst_6 [1] : vector<8x8xf32> to vector<8xf32>
    %13 = vector.shape_cast %12 : vector<8xf32> to vector<8x1xf32>
    %14 = vector.broadcast %13 : vector<8x1xf32> to vector<8x8xf32>
    %15 = arith.subf %11, %14 : vector<8x8xf32>
    %16 = math.exp %15 : vector<8x8xf32>
    %cst_7 = arith.constant dense<0.000000e+00> : vector<8xf32>
    %17 = vector.multi_reduction <add>, %16, %cst_7 [1] : vector<8x8xf32> to vector<8xf32>
    %18 = vector.shape_cast %17 : vector<8xf32> to vector<8x1xf32>
    %19 = tpu.reciprocal %18 {approx = true} : vector<8x1xf32> -> vector<8x1xf32>
    %20 = vector.broadcast %19 : vector<8x1xf32> to vector<8x8xf32>
    %21 = arith.mulf %16, %20 : vector<8x8xf32>
    %22 = arith.truncf %21 : vector<8x8xf32> to vector<8x8xbf16>
    %cst_8 = arith.constant dense<0.000000e+00> : vector<8x16xf32>
    %23 = tpu.matmul %22, %8, %cst_8 {dimension_numbers = #tpu.dot_dimension_numbers<[1], [0], [0], [1], [0, 0, 1, 1], [], []>} : vector<8x8xbf16>, vector<8x16xbf16>, vector<8x16xf32> -> vector<8x16xf32>
    %24 = vector.extract_strided_slice %3 {offsets = [0, 16], sizes = [8, 16], strides = [1, 1]} : vector<8x96xbf16> to vector<8x16xbf16>
    %cst_9 = arith.constant 2.500000e-01 : bf16
    %25 = vector.broadcast %cst_9 : bf16 to vector<8x16xbf16>
    %26 = arith.mulf %24, %25 : vector<8x16xbf16>
    %27 = vector.extract_strided_slice %3 {offsets = [0, 48], sizes = [8, 16], strides = [1, 1]} : vector<8x96xbf16> to vector<8x16xbf16>
    %28 = vector.extract_strided_slice %3 {offsets = [0, 80], sizes = [8, 16], strides = [1, 1]} : vector<8x96xbf16> to vector<8x16xbf16>
    %cst_10 = arith.constant dense<0.000000e+00> : vector<8x8xf32>
    %29 = tpu.matmul %26, %27, %cst_10 {dimension_numbers = #tpu.dot_dimension_numbers<[1], [1], [0], [0], [0, 0, 1, 0], [], []>} : vector<8x16xbf16>, vector<8x16xbf16>, vector<8x8xf32> -> vector<8x8xf32>
    %30 = vector.broadcast %1 : vector<1x8xf32> to vector<8x8xf32>
    %31 = arith.addf %29, %30 : vector<8x8xf32>
    %cst_11 = arith.constant dense<0xFF800000> : vector<8xf32>
    %32 = vector.multi_reduction <maximumf>, %31, %cst_11 [1] : vector<8x8xf32> to vector<8xf32>
    %33 = vector.shape_cast %32 : vector<8xf32> to vector<8x1xf32>
    %34 = vector.broadcast %33 : vector<8x1xf32> to vector<8x8xf32>
    %35 = arith.subf %31, %34 : vector<8x8xf32>
    %36 = math.exp %35 : vector<8x8xf32>
    %cst_12 = arith.constant dense<0.000000e+00> : vector<8xf32>
    %37 = vector.multi_reduction <add>, %36, %cst_12 [1] : vector<8x8xf32> to vector<8xf32>
    %38 = vector.shape_cast %37 : vector<8xf32> to vector<8x1xf32>
    %39 = tpu.reciprocal %38 {approx = true} : vector<8x1xf32> -> vector<8x1xf32>
    %40 = vector.broadcast %39 : vector<8x1xf32> to vector<8x8xf32>
    %41 = arith.mulf %36, %40 : vector<8x8xf32>
    %42 = arith.truncf %41 : vector<8x8xf32> to vector<8x8xbf16>
    %cst_13 = arith.constant dense<0.000000e+00> : vector<8x16xf32>
    %43 = tpu.matmul %42, %28, %cst_13 {dimension_numbers = #tpu.dot_dimension_numbers<[1], [0], [0], [1], [0, 0, 1, 1], [], []>} : vector<8x8xbf16>, vector<8x16xbf16>, vector<8x16xf32> -> vector<8x16xf32>
    %44 = tpu.concatenate %23, %43 in 1 : vector<8x16xf32>, vector<8x16xf32> -> vector<8x32xf32>
    %45 = arith.truncf %44 : vector<8x32xf32> to vector<8x32xbf16>
    %c0_14 = arith.constant 0 : index
    %c0_15 = arith.constant 0 : index
    %c0_16 = arith.constant 0 : index
    %46 = vector.load %arg4[%c0_14, %c0_15, %c0_16] : memref<1x8x32xbf16, #tpu.memory_space<vmem>>, vector<1x8x32xbf16>
    %47 = vector.shape_cast %46 : vector<1x8x32xbf16> to vector<8x32xbf16>
    %48 = vector.shape_cast %45 : vector<8x32xbf16> to vector<1x8x32xbf16>
    tpu.vector_store %arg4[%c0_14, %c0_15, %c0_16], %48 {strides = array<i32>} : memref<1x8x32xbf16, #tpu.memory_space<vmem>>, vector<1x8x32xbf16>,
    return
  }
  func.func @transform_0(%arg0: i32, %arg1: i32) -> (i32, i32, i32) {
    %c0_i32 = arith.constant 0 : i32
    %c0_i32_0 = arith.constant 0 : i32
    return %arg0, %c0_i32, %arg1 : i32, i32, i32
  }
  func.func @transform_1(%arg0: i32, %arg1: i32) -> (i32, i32, i32) {
    %c0_i32 = arith.constant 0 : i32
    %c0_i32_0 = arith.constant 0 : i32
    %c0_i32_1 = arith.constant 0 : i32
    return %arg0, %c0_i32, %c0_i32_0 : i32, i32, i32
  }
  func.func @transform_2(%arg0: i32, %arg1: i32) -> (i32, i32, i32) {
    %c0_i32 = arith.constant 0 : i32
    %c0_i32_0 = arith.constant 0 : i32
    return %arg0, %c0_i32, %arg1 : i32, i32, i32
  }
}

module attributes {stable_mosaic.version = 11 : i64} {
  func.func @_matmul_kernel(%arg0: i32, %arg1: i32, %arg2: i32, %arg3: memref<16x32xbf16, #tpu.memory_space<vmem>>, %arg4: memref<32x64xbf16, #tpu.memory_space<vmem>>, %arg5: memref<1x64xf32, #tpu.memory_space<vmem>>, %arg6: memref<16x64xbf16, #tpu.memory_space<vmem>>, %arg7: memref<16x64xf32, #tpu.memory_space<vmem>>) attributes {dimension_semantics = [#tpu.dimension_semantics<parallel>, #tpu.dimension_semantics<parallel>, #tpu.dimension_semantics<arbitrary>], iteration_bounds = array<i64: 1, 1, 1>, scalar_prefetch = 0 : i64, scratch_operands = 1 : i64, tpu.core_type = #tpu.core_type<tc>, window_params = [{transform_indices = @transform_0, window_bounds = array<i64: 16, 32>}, {transform_indices = @transform_1, window_bounds = array<i64: 32, 64>}, {transform_indices = @transform_2, window_bounds = array<i64: 1, 64>}, {transform_indices = @transform_3, window_bounds = array<i64: 16, 64>}]} {
    %c0_i32 = arith.constant 0 : i32
    %0 = arith.cmpi eq, %arg2, %c0_i32 : i32
    %1 = arith.extui %0 : i1 to i32
    %c0_i32_0 = arith.constant 0 : i32
    %2 = arith.cmpi ne, %1, %c0_i32_0 : i32
    scf.if %2 {
      %cst_10 = arith.constant 0.000000e+00 : f32
      %12 = vector.broadcast %cst_10 : f32 to vector<16x64xf32>
      %c0_11 = arith.constant 0 : index
      %c0_12 = arith.constant 0 : index
      %13 = vector.load %arg7[%c0_11, %c0_12] : memref<16x64xf32, #tpu.memory_space<vmem>>, vector<16x64xf32>
      tpu.vector_store %arg7[%c0_11, %c0_12], %12 {strides = array<i32>} : memref<16x64xf32, #tpu.memory_space<vmem>>, vector<16x64xf32>,
    } else {
    }
    %c0 = arith.constant 0 : index
    %c0_1 = arith.constant 0 : index
    %3 = vector.load %arg7[%c0, %c0_1] : memref<16x64xf32, #tpu.memory_space<vmem>>, vector<16x64xf32>
    %c0_2 = arith.constant 0 : index
    %c0_3 = arith.constant 0 : index
    %4 = vector.load %arg3[%c0_2, %c0_3] : memref<16x32xbf16, #tpu.memory_space<vmem>>, vector<16x32xbf16>
    %c0_4 = arith.constant 0 : index
    %c0_5 = arith.constant 0 : index
    %5 = vector.load %arg4[%c0_4, %c0_5] : memref<32x64xbf16, #tpu.memory_space<vmem>>, vector<32x64xbf16>
    %cst = arith.constant dense<0.000000e+00> : vector<16x64xf32>
    %6 = tpu.matmul %4, %5, %cst {dimension_numbers = #tpu.dot_dimension_numbers<[1], [0], [0], [1], [0, 0, 1, 1], [], []>} : vector<16x32xbf16>, vector<32x64xbf16>, vector<16x64xf32> -> vector<16x64xf32>
    %7 = arith.addf %3, %6 : vector<16x64xf32>
    %c0_6 = arith.constant 0 : index
    %c0_7 = arith.constant 0 : index
    %8 = vector.load %arg7[%c0_6, %c0_7] : memref<16x64xf32, #tpu.memory_space<vmem>>, vector<16x64xf32>
    tpu.vector_store %arg7[%c0_6, %c0_7], %7 {strides = array<i32>} : memref<16x64xf32, #tpu.memory_space<vmem>>, vector<16x64xf32>,
    %c0_i32_8 = arith.constant 0 : i32
    %9 = arith.cmpi eq, %arg2, %c0_i32_8 : i32
    %10 = arith.extui %9 : i1 to i32
    %c0_i32_9 = arith.constant 0 : i32
    %11 = arith.cmpi ne, %10, %c0_i32_9 : i32
    scf.if %11 {
      %c0_10 = arith.constant 0 : index
      %c0_11 = arith.constant 0 : index
      %12 = vector.load %arg7[%c0_10, %c0_11] : memref<16x64xf32, #tpu.memory_space<vmem>>, vector<16x64xf32>
      %c0_12 = arith.constant 0 : index
      %c0_13 = arith.constant 0 : index
      %13 = vector.load %arg5[%c0_12, %c0_13] : memref<1x64xf32, #tpu.memory_space<vmem>>, vector<1x64xf32>
      %14 = vector.broadcast %13 : vector<1x64xf32> to vector<16x64xf32>
      %15 = arith.addf %12, %14 : vector<16x64xf32>
      %16 = arith.mulf %15, %15 : vector<16x64xf32>
      %17 = arith.mulf %15, %16 : vector<16x64xf32>
      %cst_14 = arith.constant 4.471500e-02 : f32
      %18 = vector.broadcast %cst_14 : f32 to vector<16x64xf32>
      %19 = arith.mulf %18, %17 : vector<16x64xf32>
      %20 = arith.addf %15, %19 : vector<16x64xf32>
      %cst_15 = arith.constant 0.797884583 : f32
      %21 = vector.broadcast %cst_15 : f32 to vector<16x64xf32>
      %22 = arith.mulf %21, %20 : vector<16x64xf32>
      %23 = math.tanh %22 : vector<16x64xf32>
      %cst_16 = arith.constant 1.000000e+00 : f32
      %24 = vector.broadcast %cst_16 : f32 to vector<16x64xf32>
      %25 = arith.addf %24, %23 : vector<16x64xf32>
      %cst_17 = arith.constant 5.000000e-01 : f32
      %26 = vector.broadcast %cst_17 : f32 to vector<16x64xf32>
      %27 = arith.mulf %26, %25 : vector<16x64xf32>
      %28 = arith.mulf %15, %27 : vector<16x64xf32>
      %29 = arith.truncf %28 : vector<16x64xf32> to vector<16x64xbf16>
      %c0_18 = arith.constant 0 : index
      %c0_19 = arith.constant 0 : index
      %30 = vector.load %arg6[%c0_18, %c0_19] : memref<16x64xbf16, #tpu.memory_space<vmem>>, vector<16x64xbf16>
      tpu.vector_store %arg6[%c0_18, %c0_19], %29 {strides = array<i32>} : memref<16x64xbf16, #tpu.memory_space<vmem>>, vector<16x64xbf16>,
    } else {
    }
    return
  }
  func.func @transform_0(%arg0: i32, %arg1: i32, %arg2: i32) -> (i32, i32) {
    %c0_i32 = arith.constant 0 : i32
    return %arg0, %arg2 : i32, i32
  }
  func.func @transform_1(%arg0: i32, %arg1: i32, %arg2: i32) -> (i32, i32) {
    %c0_i32 = arith.constant 0 : i32
    return %arg2, %arg1 : i32, i32
  }
  func.func @transform_2(%arg0: i32, %arg1: i32, %arg2: i32) -> (i32, i32) {
    %c0_i32 = arith.constant 0 : i32
    %c0_i32_0 = arith.constant 0 : i32
    return %c0_i32, %arg1 : i32, i32
  }
  func.func @transform_3(%arg0: i32, %arg1: i32, %arg2: i32) -> (i32, i32) {
    %c0_i32 = arith.constant 0 : i32
    return %arg0, %arg1 : i32, i32
  }
}

module attributes {stable_mosaic.version = 11 : i64} {
  func.func @_matmul_res_ln_kernel(%arg0: i32, %arg1: i32, %arg2: memref<16x64xbf16, #tpu.memory_space<vmem>>, %arg3: memref<64x32xbf16, #tpu.memory_space<vmem>>, %arg4: memref<1x32xf32, #tpu.memory_space<vmem>>, %arg5: memref<16x32xbf16, #tpu.memory_space<vmem>>, %arg6: memref<1x32xf32, #tpu.memory_space<vmem>>, %arg7: memref<1x32xf32, #tpu.memory_space<vmem>>, %arg8: memref<16x32xbf16, #tpu.memory_space<vmem>>, %arg9: memref<16x32xf32, #tpu.memory_space<vmem>>) attributes {dimension_semantics = [#tpu.dimension_semantics<parallel>, #tpu.dimension_semantics<arbitrary>], iteration_bounds = array<i64: 1, 1>, scalar_prefetch = 0 : i64, scratch_operands = 1 : i64, tpu.core_type = #tpu.core_type<tc>, window_params = [{transform_indices = @transform_0, window_bounds = array<i64: 16, 64>}, {transform_indices = @transform_1, window_bounds = array<i64: 64, 32>}, {pipeline_mode = #tpu.pipeline_mode<synchronous>, transform_indices = @transform_2, window_bounds = array<i64: 1, 32>}, {transform_indices = @transform_3, window_bounds = array<i64: 16, 32>}, {pipeline_mode = #tpu.pipeline_mode<synchronous>, transform_indices = @transform_4, window_bounds = array<i64: 1, 32>}, {pipeline_mode = #tpu.pipeline_mode<synchronous>, transform_indices = @transform_5, window_bounds = array<i64: 1, 32>}, {transform_indices = @transform_6, window_bounds = array<i64: 16, 32>}]} {
    %c0_i32 = arith.constant 0 : i32
    %0 = arith.cmpi eq, %arg1, %c0_i32 : i32
    %1 = arith.extui %0 : i1 to i32
    %c0_i32_0 = arith.constant 0 : i32
    %2 = arith.cmpi ne, %1, %c0_i32_0 : i32
    scf.if %2 {
      %cst_10 = arith.constant 0.000000e+00 : f32
      %12 = vector.broadcast %cst_10 : f32 to vector<16x32xf32>
      %c0_11 = arith.constant 0 : index
      %c0_12 = arith.constant 0 : index
      %13 = vector.load %arg9[%c0_11, %c0_12] : memref<16x32xf32, #tpu.memory_space<vmem>>, vector<16x32xf32>
      tpu.vector_store %arg9[%c0_11, %c0_12], %12 {strides = array<i32>} : memref<16x32xf32, #tpu.memory_space<vmem>>, vector<16x32xf32>,
    } else {
    }
    %c0 = arith.constant 0 : index
    %c0_1 = arith.constant 0 : index
    %3 = vector.load %arg9[%c0, %c0_1] : memref<16x32xf32, #tpu.memory_space<vmem>>, vector<16x32xf32>
    %c0_2 = arith.constant 0 : index
    %c0_3 = arith.constant 0 : index
    %4 = vector.load %arg2[%c0_2, %c0_3] : memref<16x64xbf16, #tpu.memory_space<vmem>>, vector<16x64xbf16>
    %c0_4 = arith.constant 0 : index
    %c0_5 = arith.constant 0 : index
    %5 = vector.load %arg3[%c0_4, %c0_5] : memref<64x32xbf16, #tpu.memory_space<vmem>>, vector<64x32xbf16>
    %cst = arith.constant dense<0.000000e+00> : vector<16x32xf32>
    %6 = tpu.matmul %4, %5, %cst {dimension_numbers = #tpu.dot_dimension_numbers<[1], [0], [0], [1], [0, 0, 1, 1], [], []>} : vector<16x64xbf16>, vector<64x32xbf16>, vector<16x32xf32> -> vector<16x32xf32>
    %7 = arith.addf %3, %6 : vector<16x32xf32>
    %c0_6 = arith.constant 0 : index
    %c0_7 = arith.constant 0 : index
    %8 = vector.load %arg9[%c0_6, %c0_7] : memref<16x32xf32, #tpu.memory_space<vmem>>, vector<16x32xf32>
    tpu.vector_store %arg9[%c0_6, %c0_7], %7 {strides = array<i32>} : memref<16x32xf32, #tpu.memory_space<vmem>>, vector<16x32xf32>,
    %c0_i32_8 = arith.constant 0 : i32
    %9 = arith.cmpi eq, %arg1, %c0_i32_8 : i32
    %10 = arith.extui %9 : i1 to i32
    %c0_i32_9 = arith.constant 0 : i32
    %11 = arith.cmpi ne, %10, %c0_i32_9 : i32
    scf.if %11 {
      %c0_10 = arith.constant 0 : index
      %c0_11 = arith.constant 0 : index
      %12 = vector.load %arg9[%c0_10, %c0_11] : memref<16x32xf32, #tpu.memory_space<vmem>>, vector<16x32xf32>
      %c0_12 = arith.constant 0 : index
      %c0_13 = arith.constant 0 : index
      %13 = vector.load %arg4[%c0_12, %c0_13] : memref<1x32xf32, #tpu.memory_space<vmem>>, vector<1x32xf32>
      %14 = vector.broadcast %13 : vector<1x32xf32> to vector<16x32xf32>
      %15 = arith.addf %12, %14 : vector<16x32xf32>
      %c0_14 = arith.constant 0 : index
      %c0_15 = arith.constant 0 : index
      %16 = vector.load %arg5[%c0_14, %c0_15] : memref<16x32xbf16, #tpu.memory_space<vmem>>, vector<16x32xbf16>
      %17 = arith.extf %16 : vector<16x32xbf16> to vector<16x32xf32>
      %18 = arith.addf %15, %17 : vector<16x32xf32>
      %cst_16 = arith.constant dense<0.000000e+00> : vector<16xf32>
      %19 = vector.multi_reduction <add>, %18, %cst_16 [1] : vector<16x32xf32> to vector<16xf32>
      %20 = vector.shape_cast %19 : vector<16xf32> to vector<16x1xf32>
      %cst_17 = arith.constant 3.200000e+01 : f32
      %21 = vector.broadcast %cst_17 : f32 to vector<16x1xf32>
      %22 = arith.divf %20, %21 : vector<16x1xf32>
      %23 = vector.broadcast %22 : vector<16x1xf32> to vector<16x32xf32>
      %24 = arith.subf %18, %23 : vector<16x32xf32>
      %25 = arith.mulf %24, %24 : vector<16x32xf32>
      %cst_18 = arith.constant dense<0.000000e+00> : vector<16xf32>
      %26 = vector.multi_reduction <add>, %25, %cst_18 [1] : vector<16x32xf32> to vector<16xf32>
      %27 = vector.shape_cast %26 : vector<16xf32> to vector<16x1xf32>
      %cst_19 = arith.constant 3.200000e+01 : f32
      %28 = vector.broadcast %cst_19 : f32 to vector<16x1xf32>
      %29 = arith.divf %27, %28 : vector<16x1xf32>
      %30 = vector.broadcast %22 : vector<16x1xf32> to vector<16x32xf32>
      %31 = arith.subf %18, %30 : vector<16x32xf32>
      %cst_20 = arith.constant 9.99999996E-13 : f32
      %32 = vector.broadcast %cst_20 : f32 to vector<16x1xf32>
      %33 = arith.addf %29, %32 : vector<16x1xf32>
      %34 = math.rsqrt %33 : vector<16x1xf32>
      %35 = vector.broadcast %34 : vector<16x1xf32> to vector<16x32xf32>
      %36 = arith.mulf %31, %35 : vector<16x32xf32>
      %c0_21 = arith.constant 0 : index
      %c0_22 = arith.constant 0 : index
      %37 = vector.load %arg6[%c0_21, %c0_22] : memref<1x32xf32, #tpu.memory_space<vmem>>, vector<1x32xf32>
      %38 = vector.broadcast %37 : vector<1x32xf32> to vector<16x32xf32>
      %39 = arith.mulf %36, %38 : vector<16x32xf32>
      %c0_23 = arith.constant 0 : index
      %c0_24 = arith.constant 0 : index
      %40 = vector.load %arg7[%c0_23, %c0_24] : memref<1x32xf32, #tpu.memory_space<vmem>>, vector<1x32xf32>
      %41 = vector.broadcast %40 : vector<1x32xf32> to vector<16x32xf32>
      %42 = arith.addf %39, %41 : vector<16x32xf32>
      %43 = arith.truncf %42 : vector<16x32xf32> to vector<16x32xbf16>
      %c0_25 = arith.constant 0 : index
      %c0_26 = arith.constant 0 : index
      %44 = vector.load %arg8[%c0_25, %c0_26] : memref<16x32xbf16, #tpu.memory_space<vmem>>, vector<16x32xbf16>
      tpu.vector_store %arg8[%c0_25, %c0_26], %43 {strides = array<i32>} : memref<16x32xbf16, #tpu.memory_space<vmem>>, vector<16x32xbf16>,
    } else {
    }
    return
  }
  func.func @transform_0(%arg0: i32, %arg1: i32) -> (i32, i32) {
    %c0_i32 = arith.constant 0 : i32
    return %arg0, %arg1 : i32, i32
  }
  func.func @transform_1(%arg0: i32, %arg1: i32) -> (i32, i32) {
    %c0_i32 = arith.constant 0 : i32
    %c0_i32_0 = arith.constant 0 : i32
    return %arg1, %c0_i32 : i32, i32
  }
  func.func @transform_2(%arg0: i32, %arg1: i32) -> (i32, i32) {
    %c0_i32 = arith.constant 0 : i32
    %c0_i32_0 = arith.constant 0 : i32
    %c0_i32_1 = arith.constant 0 : i32
    return %c0_i32, %c0_i32_0 : i32, i32
  }
  func.func @transform_3(%arg0: i32, %arg1: i32) -> (i32, i32) {
    %c0_i32 = arith.constant 0 : i32
    %c0_i32_0 = arith.constant 0 : i32
    return %arg0, %c0_i32 : i32, i32
  }
  func.func @transform_4(%arg0: i32, %arg1: i32) -> (i32, i32) {
    %c0_i32 = arith.constant 0 : i32
    %c0_i32_0 = arith.constant 0 : i32
    %c0_i32_1 = arith.constant 0 : i32
    return %c0_i32, %c0_i32_0 : i32, i32
  }
  func.func @transform_5(%arg0: i32, %arg1: i32) -> (i32, i32) {
    %c0_i32 = arith.constant 0 : i32
    %c0_i32_0 = arith.constant 0 : i32
    %c0_i32_1 = arith.constant 0 : i32
    return %c0_i32, %c0_i32_0 : i32, i32
  }
  func.func @transform_6(%arg0: i32, %arg1: i32) -> (i32, i32) {
    %c0_i32 = arith.constant 0 : i32
    %c0_i32_0 = arith.constant 0 : i32
    return %arg0, %c0_i32 : i32, i32
  }
}

module attributes {stable_mosaic.version = 11 : i64} {
  func.func @_layernorm_kernel(%arg0: i32, %arg1: memref<2x32xbf16, #tpu.memory_space<vmem>>, %arg2: memref<1x32xf32, #tpu.memory_space<vmem>>, %arg3: memref<1x32xf32, #tpu.memory_space<vmem>>, %arg4: memref<2x32xbf16, #tpu.memory_space<vmem>>) attributes {dimension_semantics = [#tpu.dimension_semantics<parallel>], iteration_bounds = array<i64: 1>, scalar_prefetch = 0 : i64, scratch_operands = 0 : i64, tpu.core_type = #tpu.core_type<tc>, window_params = [{transform_indices = @transform_0, window_bounds = array<i64: 2, 32>}, {pipeline_mode = #tpu.pipeline_mode<synchronous>, transform_indices = @transform_1, window_bounds = array<i64: 1, 32>}, {pipeline_mode = #tpu.pipeline_mode<synchronous>, transform_indices = @transform_2, window_bounds = array<i64: 1, 32>}, {transform_indices = @transform_3, window_bounds = array<i64: 2, 32>}]} {
    %c0 = arith.constant 0 : index
    %c0_0 = arith.constant 0 : index
    %0 = vector.load %arg1[%c0, %c0_0] : memref<2x32xbf16, #tpu.memory_space<vmem>>, vector<2x32xbf16>
    %1 = arith.extf %0 : vector<2x32xbf16> to vector<2x32xf32>
    %cst = arith.constant dense<0.000000e+00> : vector<2xf32>
    %2 = vector.multi_reduction <add>, %1, %cst [1] : vector<2x32xf32> to vector<2xf32>
    %3 = vector.shape_cast %2 : vector<2xf32> to vector<2x1xf32>
    %cst_1 = arith.constant 3.200000e+01 : f32
    %4 = vector.broadcast %cst_1 : f32 to vector<2x1xf32>
    %5 = arith.divf %3, %4 : vector<2x1xf32>
    %6 = vector.broadcast %5 : vector<2x1xf32> to vector<2x32xf32>
    %7 = arith.subf %1, %6 : vector<2x32xf32>
    %8 = arith.mulf %7, %7 : vector<2x32xf32>
    %cst_2 = arith.constant dense<0.000000e+00> : vector<2xf32>
    %9 = vector.multi_reduction <add>, %8, %cst_2 [1] : vector<2x32xf32> to vector<2xf32>
    %10 = vector.shape_cast %9 : vector<2xf32> to vector<2x1xf32>
    %cst_3 = arith.constant 3.200000e+01 : f32
    %11 = vector.broadcast %cst_3 : f32 to vector<2x1xf32>
    %12 = arith.divf %10, %11 : vector<2x1xf32>
    %13 = vector.broadcast %5 : vector<2x1xf32> to vector<2x32xf32>
    %14 = arith.subf %1, %13 : vector<2x32xf32>
    %cst_4 = arith.constant 9.99999974E-6 : f32
    %15 = vector.broadcast %cst_4 : f32 to vector<2x1xf32>
    %16 = arith.addf %12, %15 : vector<2x1xf32>
    %17 = math.rsqrt %16 : vector<2x1xf32>
    %18 = vector.broadcast %17 : vector<2x1xf32> to vector<2x32xf32>
    %19 = arith.mulf %14, %18 : vector<2x32xf32>
    %c0_5 = arith.constant 0 : index
    %c0_6 = arith.constant 0 : index
    %20 = vector.load %arg2[%c0_5, %c0_6] : memref<1x32xf32, #tpu.memory_space<vmem>>, vector<1x32xf32>
    %21 = vector.broadcast %20 : vector<1x32xf32> to vector<2x32xf32>
    %22 = arith.mulf %19, %21 : vector<2x32xf32>
    %c0_7 = arith.constant 0 : index
    %c0_8 = arith.constant 0 : index
    %23 = vector.load %arg3[%c0_7, %c0_8] : memref<1x32xf32, #tpu.memory_space<vmem>>, vector<1x32xf32>
    %24 = vector.broadcast %23 : vector<1x32xf32> to vector<2x32xf32>
    %25 = arith.addf %22, %24 : vector<2x32xf32>
    %26 = arith.truncf %25 : vector<2x32xf32> to vector<2x32xbf16>
    %c0_9 = arith.constant 0 : index
    %c0_10 = arith.constant 0 : index
    %27 = vector.load %arg4[%c0_9, %c0_10] : memref<2x32xbf16, #tpu.memory_space<vmem>>, vector<2x32xbf16>
    tpu.vector_store %arg4[%c0_9, %c0_10], %26 {strides = array<i32>} : memref<2x32xbf16, #tpu.memory_space<vmem>>, vector<2x32xbf16>,
    return
  }
  func.func @transform_0(%arg0: i32) -> (i32, i32) {
    %c0_i32 = arith.constant 0 : i32
    %c0_i32_0 = arith.constant 0 : i32
    return %arg0, %c0_i32 : i32, i32
  }
  func.func @transform_1(%arg0: i32) -> (i32, i32) {
    %c0_i32 = arith.constant 0 : i32
    %c0_i32_0 = arith.constant 0 : i32
    %c0_i32_1 = arith.constant 0 : i32
    return %c0_i32, %c0_i32_0 : i32, i32
  }
  func.func @transform_2(%arg0: i32) -> (i32, i32) {
    %c0_i32 = arith.constant 0 : i32
    %c0_i32_0 = arith.constant 0 : i32
    %c0_i32_1 = arith.constant 0 : i32
    return %c0_i32, %c0_i32_0 : i32, i32
  }
  func.func @transform_3(%arg0: i32) -> (i32, i32) {
    %c0_i32 = arith.constant 0 : i32
    %c0_i32_0 = arith.constant 0 : i32
    return %arg0, %c0_i32 : i32, i32
  }
}

module attributes {stable_mosaic.version = 11 : i64} {
  func.func @_matmul_kernel(%arg0: i32, %arg1: i32, %arg2: i32, %arg3: memref<2x32xbf16, #tpu.memory_space<vmem>>, %arg4: memref<32x4xbf16, #tpu.memory_space<vmem>>, %arg5: memref<1x4xf32, #tpu.memory_space<vmem>>, %arg6: memref<2x4xf32, #tpu.memory_space<vmem>>, %arg7: memref<2x4xf32, #tpu.memory_space<vmem>>) attributes {dimension_semantics = [#tpu.dimension_semantics<parallel>, #tpu.dimension_semantics<parallel>, #tpu.dimension_semantics<arbitrary>], iteration_bounds = array<i64: 1, 1, 1>, scalar_prefetch = 0 : i64, scratch_operands = 1 : i64, tpu.core_type = #tpu.core_type<tc>, window_params = [{transform_indices = @transform_0, window_bounds = array<i64: 2, 32>}, {transform_indices = @transform_1, window_bounds = array<i64: 32, 4>}, {transform_indices = @transform_2, window_bounds = array<i64: 1, 4>}, {transform_indices = @transform_3, window_bounds = array<i64: 2, 4>}]} {
    %c0_i32 = arith.constant 0 : i32
    %0 = arith.cmpi eq, %arg2, %c0_i32 : i32
    %1 = arith.extui %0 : i1 to i32
    %c0_i32_0 = arith.constant 0 : i32
    %2 = arith.cmpi ne, %1, %c0_i32_0 : i32
    scf.if %2 {
      %cst_10 = arith.constant 0.000000e+00 : f32
      %12 = vector.broadcast %cst_10 : f32 to vector<2x4xf32>
      %c0_11 = arith.constant 0 : index
      %c0_12 = arith.constant 0 : index
      %13 = vector.load %arg7[%c0_11, %c0_12] : memref<2x4xf32, #tpu.memory_space<vmem>>, vector<2x4xf32>
      tpu.vector_store %arg7[%c0_11, %c0_12], %12 {strides = array<i32>} : memref<2x4xf32, #tpu.memory_space<vmem>>, vector<2x4xf32>,
    } else {
    }
    %c0 = arith.constant 0 : index
    %c0_1 = arith.constant 0 : index
    %3 = vector.load %arg7[%c0, %c0_1] : memref<2x4xf32, #tpu.memory_space<vmem>>, vector<2x4xf32>
    %c0_2 = arith.constant 0 : index
    %c0_3 = arith.constant 0 : index
    %4 = vector.load %arg3[%c0_2, %c0_3] : memref<2x32xbf16, #tpu.memory_space<vmem>>, vector<2x32xbf16>
    %c0_4 = arith.constant 0 : index
    %c0_5 = arith.constant 0 : index
    %5 = vector.load %arg4[%c0_4, %c0_5] : memref<32x4xbf16, #tpu.memory_space<vmem>>, vector<32x4xbf16>
    %cst = arith.constant dense<0.000000e+00> : vector<2x4xf32>
    %6 = tpu.matmul %4, %5, %cst {dimension_numbers = #tpu.dot_dimension_numbers<[1], [0], [0], [1], [0, 0, 1, 1], [], []>} : vector<2x32xbf16>, vector<32x4xbf16>, vector<2x4xf32> -> vector<2x4xf32>
    %7 = arith.addf %3, %6 : vector<2x4xf32>
    %c0_6 = arith.constant 0 : index
    %c0_7 = arith.constant 0 : index
    %8 = vector.load %arg7[%c0_6, %c0_7] : memref<2x4xf32, #tpu.memory_space<vmem>>, vector<2x4xf32>
    tpu.vector_store %arg7[%c0_6, %c0_7], %7 {strides = array<i32>} : memref<2x4xf32, #tpu.memory_space<vmem>>, vector<2x4xf32>,
    %c0_i32_8 = arith.constant 0 : i32
    %9 = arith.cmpi eq, %arg2, %c0_i32_8 : i32
    %10 = arith.extui %9 : i1 to i32
    %c0_i32_9 = arith.constant 0 : i32
    %11 = arith.cmpi ne, %10, %c0_i32_9 : i32
    scf.if %11 {
      %c0_10 = arith.constant 0 : index
      %c0_11 = arith.constant 0 : index
      %12 = vector.load %arg7[%c0_10, %c0_11] : memref<2x4xf32, #tpu.memory_space<vmem>>, vector<2x4xf32>
      %c0_12 = arith.constant 0 : index
      %c0_13 = arith.constant 0 : index
      %13 = vector.load %arg5[%c0_12, %c0_13] : memref<1x4xf32, #tpu.memory_space<vmem>>, vector<1x4xf32>
      %14 = vector.broadcast %13 : vector<1x4xf32> to vector<2x4xf32>
      %15 = arith.addf %12, %14 : vector<2x4xf32>
      %c0_14 = arith.constant 0 : index
      %c0_15 = arith.constant 0 : index
      %16 = vector.load %arg6[%c0_14, %c0_15] : memref<2x4xf32, #tpu.memory_space<vmem>>, vector<2x4xf32>
      tpu.vector_store %arg6[%c0_14, %c0_15], %15 {strides = array<i32>} : memref<2x4xf32, #tpu.memory_space<vmem>>, vector<2x4xf32>,
    } else {
    }
    return
  }
  func.func @transform_0(%arg0: i32, %arg1: i32, %arg2: i32) -> (i32, i32) {
    %c0_i32 = arith.constant 0 : i32
    return %arg0, %arg2 : i32, i32
  }
  func.func @transform_1(%arg0: i32, %arg1: i32, %arg2: i32) -> (i32, i32) {
    %c0_i32 = arith.constant 0 : i32
    return %arg2, %arg1 : i32, i32
  }
  func.func @transform_2(%arg0: i32, %arg1: i32, %arg2: i32) -> (i32, i32) {
    %c0_i32 = arith.constant 0 : i32
    %c0_i32_0 = arith.constant 0 : i32
    return %c0_i32, %arg1 : i32, i32
  }
  func.func @transform_3(%arg0: i32, %arg1: i32, %arg2: i32) -> (i32, i32) {
    %c0_i32 = arith.constant 0 : i32
    return %arg0, %arg1 : i32, i32
  }
}

</mosaic_0001>

<llo_original>
// kernel: transformer_classifier_forward.14
$region0: #{transformer_classifier_forward.14}
  #allocation0 [shape = 'u32[]', space=smem, size = 0x4, offset = 0x4, fixed_abs, tag = 'smem constant byte address 0x4 - core index']
  #allocation1 [shape = 'u32[72,128]{1,0:T(1,128)}', space=vmem, size = 0x9000, scoped, tag = 'internal scratch']
  #allocation2 [shape = 'f32[16,96]{1,0:T(8,128)}', space=vmem, size = 0x2000, scoped, tag = 'scratch operand']
  %s0 = inlined_call_operand.vmem [shape: bf16[16,32], index: 0, kind: input, shape index: {}]
  %s1 = inlined_call_operand.vmem [shape: bf16[32,96], index: 1, kind: input, shape index: {}]
  %s2 = inlined_call_operand.vmem [shape: f32[1,96], index: 2, kind: input, shape index: {}]
  %s3 = inlined_call_operand.vmem [shape: bf16[16,96], index: 3, kind: output, shape index: {}]
  %s4 = sld [smem:[#allocation0]]
  $region30: #{transformer_classifier_forward.14} parent=0
    _
  %s6 = ssub.s32 1, %s4
  %s7 = scalar_select 0, %s6, %s4
  // Predicated region
  $region2: #{transformer_classifier_forward.14} parent=0 // pred_check
    _
  $region3: #{transformer_classifier_forward.14} parent=0 // pred_check_branch
    %9 = sbr.rel (0) target = $region5
  $region4: #{transformer_classifier_forward.14} parent=0 // pred_region
    _
  $region5: #{transformer_classifier_forward.14} parent=0 // pred_fallthru
    _
  // Predicated region
  $region6: #{transformer_classifier_forward.14} parent=0 // pred_check
    _
  $region7: #{transformer_classifier_forward.14} parent=0 // pred_check_branch
    %11 = sbr.rel (0) target = $region9
  $region8: #{transformer_classifier_forward.14} parent=0 // pred_region
    _
  $region9: #{transformer_classifier_forward.14} parent=0 // pred_fallthru
    _
  // Predicated region
  $region10: #{transformer_classifier_forward.14} parent=0 // pred_check
    _
  $region11: #{transformer_classifier_forward.14} parent=0 // pred_check_branch
    %13 = sbr.rel (0) target = $region13
  $region12: #{transformer_classifier_forward.14} parent=0 // pred_region
    _
  $region13: #{transformer_classifier_forward.14} parent=0 // pred_fallthru
    _
  %p15 = scmp.eq.s32.totalorder 0, 0
  // Predicated region
  $region14: #{transformer_classifier_forward.14} parent=0 // pred_check
    %p16 = pneg %p15
  $region15: #{transformer_classifier_forward.14} parent=0 // pred_check_branch
    %18 = sbr.rel (%p16) target = $region17
  $region16: #{transformer_classifier_forward.14} parent=0 // pred_region
    %vm19 = vcmask 785408
    %20 = vst.msk [vmem:[#allocation2] sm:$0xff] %vm19, 0.0
    %21 = vst.msk [vmem:[#allocation2 + $0x8] sm:$0xff] %vm19, 0.0
  $region17: #{transformer_classifier_forward.14} parent=0 // pred_fallthru
    _
  %v22 = vld [vmem:[#allocation2] sm:$0xff]
  %v23 = vld [vmem:[#allocation2 + $0x8] sm:$0xff]
  %v24 = vld [vmem:[%s0] sm:$0xf]
  %v25 = vld [vmem:[%s0 + $0x4] sm:$0xf]
  %v26 = vld [vmem:[%s1] sm:$0xf]
  %v27 = vld [vmem:[%s1 + $0x4] sm:$0xf]
  %v28 = vld [vmem:[%s1 + $0x8] sm:$0xf]
  %v29 = vld [vmem:[%s1 + $0xc] sm:$0xf]
  %v32 = vunpack.c.l.b16 %v24
  %v33 = vunpack.c.l.b16 %v25
  %v34 = vpack.c.b16 %v33, %v32
  %v39 = vunpack.c.l.b16 %v26
  %v40 = vunpack.c.l.b16 %v27
  %v41 = vunpack.c.l.b16 %v28
  %v42 = vunpack.c.l.b16 %v29
  %v43 = vpack.c.b16 %v40, %v39
  %v44 = vpack.c.b16 %v42, %v41
  %vm47 = vcmask 261120
  %v49 = vsel %vm47, %v34, 0
  %51 = vmatpush.bf16.msra.mxu0 0
  %52 = vmatpush.bf16.msra.mxu0 0
  %53 = vmatpush.bf16.msra.mxu0 0
  %54 = vmatpush.bf16.msra.mxu0 0
  %55 = vmatpush.bf16.msra.mxu0 0
  %56 = vmatpush.bf16.msra.mxu0 0
  %57 = vmatpush.bf16.msra.mxu0 %v44
  %58 = vmatpush.bf16.msra.mxu0 %v43
  %59 = vmatmul.bf16.gmra.mxu0 %v49
  %v60 = vpop.f32.mrf.mxu0
  %v61 = vadd.f32 0.0, %v60
  %v62 = vpop.f32.mrf.mxu0
  %v63 = vadd.f32 0.0, %v62
  %64 = vdwg.mxu0
  %v65 = vadd.f32 %v22, %v61
  %v66 = vadd.f32 %v23, %v63
  %vm67 = vcmask 785408
  %68 = vst.msk [vmem:[#allocation2] sm:$0xff] %vm67, %v65
  %69 = vst.msk [vmem:[#allocation2 + $0x8] sm:$0xff] %vm67, %v66
  // Predicated region
  $region18: #{transformer_classifier_forward.14} parent=0 // pred_check
    %p70 = pneg %p15
  $region19: #{transformer_classifier_forward.14} parent=0 // pred_check_branch
    %72 = sbr.rel (%p70) target = $region21
  $region20: #{transformer_classifier_forward.14} parent=0 // pred_region
    %v73 = vld [vmem:[#allocation2] sm:$0xff]
    %v74 = vld [vmem:[#allocation2 + $0x8] sm:$0xff]
    %v75 = vld [vmem:[%s2] sm:$0x1]
    %v77 = vperm.slane %v75, 0
    %v79 = vadd.f32 %v73, %v77
    %v80 = vadd.f32 %v74, %v77
    %v81 = vpack.c.bf16 %v79, %v79
    %v82 = vpack.c.bf16 %v80, %v80
    %vm83 = vcmask 781312
    %84 = vst.msk [vmem:[%s3] sm:$0xf] %vm83, %v81
    %85 = vst.msk [vmem:[%s3 + $0x4] sm:$0xf] %vm83, %v82
  $region21: #{transformer_classifier_forward.14} parent=0 // pred_fallthru
    _
  // Predicated region
  $region22: #{transformer_classifier_forward.14} parent=0 // pred_check
    _
  $region23: #{transformer_classifier_forward.14} parent=0 // pred_check_branch
    %87 = sbr.rel (0) target = $region25
  $region24: #{transformer_classifier_forward.14} parent=0 // pred_region
    _
  $region25: #{transformer_classifier_forward.14} parent=0 // pred_fallthru
    _
  // Predicated region
  $region26: #{transformer_classifier_forward.14} parent=0 // pred_check
    _
  $region27: #{transformer_classifier_forward.14} parent=0 // pred_check_branch
    %89 = sbr.rel (0) target = $region29
  $region28: #{transformer_classifier_forward.14} parent=0 // pred_region
    _
  $region29: #{transformer_classifier_forward.14} parent=0 // pred_fallthru
    _

// kernel: transformer_classifier_forward.13
$region0: #{transformer_classifier_forward.13}
  #allocation0 [shape = 'u32[]', space=smem, size = 0x4, offset = 0x4, fixed_abs, tag = 'smem constant byte address 0x4 - core index']
  #allocation1 [shape = 'u32[72,128]{1,0:T(1,128)}', space=vmem, size = 0x9000, scoped, tag = 'internal scratch']
  %s0 = inlined_call_operand.vmem [shape: bf16[16,32], index: 0, kind: input, shape index: {}]
  %s1 = inlined_call_operand.vmem [shape: f32[1,32], index: 1, kind: input, shape index: {}]
  %s2 = inlined_call_operand.vmem [shape: f32[1,32], index: 2, kind: input, shape index: {}]
  %s3 = inlined_call_operand.vmem [shape: bf16[16,32], index: 3, kind: output, shape index: {}]
  %s4 = sld [smem:[#allocation0]]
  $region22: #{transformer_classifier_forward.13} parent=0
    _
  %s6 = ssub.s32 1, %s4
  %s7 = scalar_select 0, %s6, %s4
  // Predicated region
  $region2: #{transformer_classifier_forward.13} parent=0 // pred_check
    _
  $region3: #{transformer_classifier_forward.13} parent=0 // pred_check_branch
    %9 = sbr.rel (0) target = $region5
  $region4: #{transformer_classifier_forward.13} parent=0 // pred_region
    _
  $region5: #{transformer_classifier_forward.13} parent=0 // pred_fallthru
    _
  // Predicated region
  $region6: #{transformer_classifier_forward.13} parent=0 // pred_check
    _
  $region7: #{transformer_classifier_forward.13} parent=0 // pred_check_branch
    %11 = sbr.rel (0) target = $region9
  $region8: #{transformer_classifier_forward.13} parent=0 // pred_region
    _
  $region9: #{transformer_classifier_forward.13} parent=0 // pred_fallthru
    _
  // Predicated region
  $region10: #{transformer_classifier_forward.13} parent=0 // pred_check
    _
  $region11: #{transformer_classifier_forward.13} parent=0 // pred_check_branch
    %13 = sbr.rel (0) target = $region13
  $region12: #{transformer_classifier_forward.13} parent=0 // pred_region
    _
  $region13: #{transformer_classifier_forward.13} parent=0 // pred_fallthru
    _
  %v14 = vld [vmem:[%s0] sm:$0xf]
  %v15 = vld [vmem:[%s0 + $0x4] sm:$0xf]
  %v16 = vunpack.c.l.bf16 %v14
  %v17 = vunpack.c.l.bf16 %v15
  %vm18 = vcmask 261120
  %v19 = vsel %vm18, %v16, 0.0
  %20 = vadd.xlane.f32.xlu0 %v19
  %v21 = vpop.xlane.xlu0 %20
  %v22 = vsel %vm18, %v17, 0.0
  %23 = vadd.xlane.f32.xlu0 %v22
  %v24 = vpop.xlane.xlu0 %23
  %v25 = vrcp.pop 32.0
  %v26 = vmul.f32 32.0, %v25
  %v27 = vsub.f32 1.0, %v26
  %v28 = vmul.f32 %v25, %v27
  %v29 = vadd.f32 %v25, %v28
  %vm30 = vweird.f32 %v25
  %v31 = vsel %vm30, %v25, %v29
  %v32 = vmul.f32 %v21, %v31
  %v33 = vmul.f32 %v24, %v31
  %v34 = vsub.f32 %v16, %v32
  %v35 = vsub.f32 %v17, %v33
  %v36 = vmul.f32 %v34, %v34
  %v37 = vmul.f32 %v35, %v35
  %v38 = vsel %vm18, %v36, 0.0
  %39 = vadd.xlane.f32.xlu0 %v38
  %v40 = vpop.xlane.xlu0 %39
  %v41 = vsel %vm18, %v37, 0.0
  %42 = vadd.xlane.f32.xlu0 %v41
  %v43 = vpop.xlane.xlu0 %42
  %v44 = vmul.f32 %v40, %v31
  %v45 = vmul.f32 %v43, %v31
  %v46 = vadd.f32 %v44, 1e-12
  %v47 = vadd.f32 %v45, 1e-12
  %v48 = vrsqrt.pop %v46
  %v49 = vmul.f32 %v48, %v46
  %v50 = vmul.f32 %v49, %v48
  %v51 = vmul.f32 0.5, %v50
  %v52 = vsub.f32 1.5, %v51
  %v53 = vmul.f32 %v48, %v52
  %vm54 = vweird.f32 %v46
  %vm55 = vweird.f32 %v48
  %vm56 = vmor %vm54, %vm55
  %v57 = vsel %vm56, %v48, %v53
  %v58 = vrsqrt.pop %v47
  %v59 = vmul.f32 %v58, %v47
  %v60 = vmul.f32 %v59, %v58
  %v61 = vmul.f32 0.5, %v60
  %v62 = vsub.f32 1.5, %v61
  %v63 = vmul.f32 %v58, %v62
  %vm64 = vweird.f32 %v47
  %vm65 = vweird.f32 %v58
  %vm66 = vmor %vm64, %vm65
  %v67 = vsel %vm66, %v58, %v63
  %v68 = vmul.f32 %v34, %v57
  %v69 = vmul.f32 %v35, %v67
  %v70 = vld [vmem:[%s1] sm:$0x1]
  %v72 = vperm.slane %v70, 0
  %v74 = vmul.f32 %v68, %v72
  %v75 = vmul.f32 %v69, %v72
  %v76 = vld [vmem:[%s2] sm:$0x1]
  %v78 = vperm.slane %v76, 0
  %v80 = vadd.f32 %v74, %v78
  %v81 = vadd.f32 %v75, %v78
  %v82 = vpack.c.bf16 %v80, %v80
  %v83 = vpack.c.bf16 %v81, %v81
  %vm84 = vcmask 257024
  %85 = vst.msk [vmem:[%s3] sm:$0xf] %vm84, %v82
  %86 = vst.msk [vmem:[%s3 + $0x4] sm:$0xf] %vm84, %v83
  // Predicated region
  $region14: #{transformer_classifier_forward.13} parent=0 // pred_check
    _
  $region15: #{transformer_classifier_forward.13} parent=0 // pred_check_branch
    %88 = sbr.rel (0) target = $region17
  $region16: #{transformer_classifier_forward.13} parent=0 // pred_region
    _
  $region17: #{transformer_classifier_forward.13} parent=0 // pred_fallthru
    _
  // Predicated region
  $region18: #{transformer_classifier_forward.13} parent=0 // pred_check
    _
  $region19: #{transformer_classifier_forward.13} parent=0 // pred_check_branch
    %90 = sbr.rel (0) target = $region21
  $region20: #{transformer_classifier_forward.13} parent=0 // pred_region
    _
  $region21: #{transformer_classifier_forward.13} parent=0 // pred_fallthru
    _

// kernel: transformer_classifier_forward.16
$region0: #{transformer_classifier_forward.16}
  #allocation0 [shape = 'u32[]', space=smem, size = 0x4, offset = 0x4, fixed_abs, tag = 'smem constant byte address 0x4 - core index']
  #allocation1 [shape = 'u32[72,128]{1,0:T(1,128)}', space=vmem, size = 0x9000, scoped, tag = 'internal scratch']
  #allocation2 [shape = 'f32[16,32]{1,0:T(8,128)}', space=vmem, size = 0x2000, scoped, tag = 'scratch operand']
  %s0 = inlined_call_operand.vmem [shape: bf16[16,32], index: 0, kind: input, shape index: {}]
  %s1 = inlined_call_operand.vmem [shape: bf16[32,32], index: 1, kind: input, shape index: {}]
  %s2 = inlined_call_operand.vmem [shape: f32[1,32], index: 2, kind: input, shape index: {}]
  %s3 = inlined_call_operand.vmem [shape: bf16[16,32], index: 3, kind: input, shape index: {}]
  %s4 = inlined_call_operand.vmem [shape: f32[1,32], index: 4, kind: input, shape index: {}]
  %s5 = inlined_call_operand.vmem [shape: f32[1,32], index: 5, kind: input, shape index: {}]
  %s6 = inlined_call_operand.vmem [shape: bf16[16,32], index: 6, kind: output, shape index: {}]
  %s7 = sld [smem:[#allocation0]]
  $region42: #{transformer_classifier_forward.16} parent=0
    _
  %s9 = ssub.s32 1, %s7
  %s10 = scalar_select 0, %s9, %s7
  // Predicated region
  $region2: #{transformer_classifier_forward.16} parent=0 // pred_check
    _
  $region3: #{transformer_classifier_forward.16} parent=0 // pred_check_branch
    %12 = sbr.rel (0) target = $region5
  $region4: #{transformer_classifier_forward.16} parent=0 // pred_region
    _
  $region5: #{transformer_classifier_forward.16} parent=0 // pred_fallthru
    _
  // Predicated region
  $region6: #{transformer_classifier_forward.16} parent=0 // pred_check
    _
  $region7: #{transformer_classifier_forward.16} parent=0 // pred_check_branch
    %14 = sbr.rel (0) target = $region9
  $region8: #{transformer_classifier_forward.16} parent=0 // pred_region
    _
  $region9: #{transformer_classifier_forward.16} parent=0 // pred_fallthru
    _
  // Predicated region
  $region10: #{transformer_classifier_forward.16} parent=0 // pred_check
    _
  $region11: #{transformer_classifier_forward.16} parent=0 // pred_check_branch
    %16 = sbr.rel (0) target = $region13
  $region12: #{transformer_classifier_forward.16} parent=0 // pred_region
    _
  $region13: #{transformer_classifier_forward.16} parent=0 // pred_fallthru
    _
  // Predicated region
  $region14: #{transformer_classifier_forward.16} parent=0 // pred_check
    _
  $region15: #{transformer_classifier_forward.16} parent=0 // pred_check_branch
    %18 = sbr.rel (0) target = $region17
  $region16: #{transformer_classifier_forward.16} parent=0 // pred_region
    _
  $region17: #{transformer_classifier_forward.16} parent=0 // pred_fallthru
    _
  // Predicated region
  $region18: #{transformer_classifier_forward.16} parent=0 // pred_check
    _
  $region19: #{transformer_classifier_forward.16} parent=0 // pred_check_branch
    %20 = sbr.rel (0) target = $region21
  $region20: #{transformer_classifier_forward.16} parent=0 // pred_region
    _
  $region21: #{transformer_classifier_forward.16} parent=0 // pred_fallthru
    _
  // Predicated region
  $region22: #{transformer_classifier_forward.16} parent=0 // pred_check
    _
  $region23: #{transformer_classifier_forward.16} parent=0 // pred_check_branch
    %22 = sbr.rel (0) target = $region25
  $region24: #{transformer_classifier_forward.16} parent=0 // pred_region
    _
  $region25: #{transformer_classifier_forward.16} parent=0 // pred_fallthru
    _
  %p24 = scmp.eq.s32.totalorder 0, 0
  // Predicated region
  $region26: #{transformer_classifier_forward.16} parent=0 // pred_check
    %p25 = pneg %p24
  $region27: #{transformer_classifier_forward.16} parent=0 // pred_check_branch
    %27 = sbr.rel (%p25) target = $region29
  $region28: #{transformer_classifier_forward.16} parent=0 // pred_region
    %vm28 = vcmask 261120
    %29 = vst.msk [vmem:[#allocation2] sm:$0xff] %vm28, 0.0
    %30 = vst.msk [vmem:[#allocation2 + $0x8] sm:$0xff] %vm28, 0.0
  $region29: #{transformer_classifier_forward.16} parent=0 // pred_fallthru
    _
  %v31 = vld [vmem:[#allocation2] sm:$0xff]
  %v32 = vld [vmem:[#allocation2 + $0x8] sm:$0xff]
  %v33 = vld [vmem:[%s0] sm:$0xf]
  %v34 = vld [vmem:[%s0 + $0x4] sm:$0xf]
  %v35 = vld [vmem:[%s1] sm:$0xf]
  %v36 = vld [vmem:[%s1 + $0x4] sm:$0xf]
  %v37 = vld [vmem:[%s1 + $0x8] sm:$0xf]
  %v38 = vld [vmem:[%s1 + $0xc] sm:$0xf]
  %v41 = vunpack.c.l.b16 %v33
  %v42 = vunpack.c.l.b16 %v34
  %v43 = vpack.c.b16 %v42, %v41
  %v48 = vunpack.c.l.b16 %v35
  %v49 = vunpack.c.l.b16 %v36
  %v50 = vunpack.c.l.b16 %v37
  %v51 = vunpack.c.l.b16 %v38
  %v52 = vpack.c.b16 %v49, %v48
  %v53 = vpack.c.b16 %v51, %v50
  %vm56 = vcmask 261120
  %v58 = vsel %vm56, %v43, 0
  %60 = vmatpush.bf16.msra.mxu0 0
  %61 = vmatpush.bf16.msra.mxu0 0
  %62 = vmatpush.bf16.msra.mxu0 0
  %63 = vmatpush.bf16.msra.mxu0 0
  %64 = vmatpush.bf16.msra.mxu0 0
  %65 = vmatpush.bf16.msra.mxu0 0
  %66 = vmatpush.bf16.msra.mxu0 %v53
  %67 = vmatpush.bf16.msra.mxu0 %v52
  %68 = vmatmul.bf16.gmra.mxu0 %v58
  %v69 = vpop.f32.mrf.mxu0
  %v70 = vadd.f32 0.0, %v69
  %v71 = vpop.f32.mrf.mxu0
  %v72 = vadd.f32 0.0, %v71
  %73 = vdwg.mxu0
  %v74 = vadd.f32 %v31, %v70
  %v75 = vadd.f32 %v32, %v72
  %76 = vst.msk [vmem:[#allocation2] sm:$0xff] %vm56, %v74
  %77 = vst.msk [vmem:[#allocation2 + $0x8] sm:$0xff] %vm56, %v75
  // Predicated region
  $region30: #{transformer_classifier_forward.16} parent=0 // pred_check
    %p78 = pneg %p24
  $region31: #{transformer_classifier_forward.16} parent=0 // pred_check_branch
    %80 = sbr.rel (%p78) target = $region33
  $region32: #{transformer_classifier_forward.16} parent=0 // pred_region
    %v81 = vld [vmem:[#allocation2] sm:$0xff]
    %v82 = vld [vmem:[#allocation2 + $0x8] sm:$0xff]
    %v83 = vld [vmem:[%s2] sm:$0x1]
    %v85 = vperm.slane %v83, 0
    %v87 = vadd.f32 %v81, %v85
    %v88 = vadd.f32 %v82, %v85
    %v89 = vld [vmem:[%s3] sm:$0xf]
    %v90 = vld [vmem:[%s3 + $0x4] sm:$0xf]
    %v91 = vunpack.c.l.bf16 %v89
    %v92 = vunpack.c.l.bf16 %v90
    %v93 = vadd.f32 %v87, %v91
    %v94 = vadd.f32 %v88, %v92
    %v95 = vsel %vm56, %v93, 0.0
    %96 = vadd.xlane.f32.xlu0 %v95
    %v97 = vpop.xlane.xlu0 %96
    %v98 = vsel %vm56, %v94, 0.0
    %99 = vadd.xlane.f32.xlu0 %v98
    %v100 = vpop.xlane.xlu0 %99
    %v101 = vrcp.pop 32.0
    %v102 = vmul.f32 32.0, %v101
    %v103 = vsub.f32 1.0, %v102
    %v104 = vmul.f32 %v101, %v103
    %v105 = vadd.f32 %v101, %v104
    %vm106 = vweird.f32 %v101
    %v107 = vsel %vm106, %v101, %v105
    %v108 = vmul.f32 %v97, %v107
    %v109 = vmul.f32 %v100, %v107
    %v110 = vsub.f32 %v93, %v108
    %v111 = vsub.f32 %v94, %v109
    %v112 = vmul.f32 %v110, %v110
    %v113 = vmul.f32 %v111, %v111
    %v114 = vsel %vm56, %v112, 0.0
    %115 = vadd.xlane.f32.xlu0 %v114
    %v116 = vpop.xlane.xlu0 %115
    %v117 = vsel %vm56, %v113, 0.0
    %118 = vadd.xlane.f32.xlu0 %v117
    %v119 = vpop.xlane.xlu0 %118
    %v120 = vmul.f32 %v116, %v107
    %v121 = vmul.f32 %v119, %v107
    %v122 = vadd.f32 %v120, 1e-12
    %v123 = vadd.f32 %v121, 1e-12
    %v124 = vrsqrt.pop %v122
    %v125 = vmul.f32 %v124, %v122
    %v126 = vmul.f32 %v125, %v124
    %v127 = vmul.f32 0.5, %v126
    %v128 = vsub.f32 1.5, %v127
    %v129 = vmul.f32 %v124, %v128
    %vm130 = vweird.f32 %v122
    %vm131 = vweird.f32 %v124
    %vm132 = vmor %vm130, %vm131
    %v133 = vsel %vm132, %v124, %v129
    %v134 = vrsqrt.pop %v123
    %v135 = vmul.f32 %v134, %v123
    %v136 = vmul.f32 %v135, %v134
    %v137 = vmul.f32 0.5, %v136
    %v138 = vsub.f32 1.5, %v137
    %v139 = vmul.f32 %v134, %v138
    %vm140 = vweird.f32 %v123
    %vm141 = vweird.f32 %v134
    %vm142 = vmor %vm140, %vm141
    %v143 = vsel %vm142, %v134, %v139
    %v144 = vmul.f32 %v110, %v133
    %v145 = vmul.f32 %v111, %v143
    %v146 = vld [vmem:[%s4] sm:$0x1]
    %v148 = vperm.slane %v146, 0
    %v150 = vmul.f32 %v144, %v148
    %v151 = vmul.f32 %v145, %v148
    %v152 = vld [vmem:[%s5] sm:$0x1]
    %v154 = vperm.slane %v152, 0
    %v156 = vadd.f32 %v150, %v154
    %v157 = vadd.f32 %v151, %v154
    %v158 = vpack.c.bf16 %v156, %v156
    %v159 = vpack.c.bf16 %v157, %v157
    %vm160 = vcmask 257024
    %161 = vst.msk [vmem:[%s6] sm:$0xf] %vm160, %v158
    %162 = vst.msk [vmem:[%s6 + $0x4] sm:$0xf] %vm160, %v159
  $region33: #{transformer_classifier_forward.16} parent=0 // pred_fallthru
    _
  // Predicated region
  $region34: #{transformer_classifier_forward.16} parent=0 // pred_check
    _
  $region35: #{transformer_classifier_forward.16} parent=0 // pred_check_branch
    %164 = sbr.rel (0) target = $region37
  $region36: #{transformer_classifier_forward.16} parent=0 // pred_region
    _
  $region37: #{transformer_classifier_forward.16} parent=0 // pred_fallthru
    _
  // Predicated region
  $region38: #{transformer_classifier_forward.16} parent=0 // pred_check
    _
  $region39: #{transformer_classifier_forward.16} parent=0 // pred_check_branch
    %166 = sbr.rel (0) target = $region41
  $region40: #{transformer_classifier_forward.16} parent=0 // pred_region
    _
  $region41: #{transformer_classifier_forward.16} parent=0 // pred_fallthru
    _

// kernel: transformer_classifier_forward.15
$region0: #{transformer_classifier_forward.15}
  #allocation0 [shape = 'u32[]', space=smem, size = 0x4, offset = 0x4, fixed_abs, tag = 'smem constant byte address 0x4 - core index']
  #allocation1 [shape = 'u32[72,128]{1,0:T(1,128)}', space=vmem, size = 0x9000, scoped, tag = 'internal scratch']
  %s0 = inlined_call_operand.vmem [shape: bf16[2,8,96], index: 0, kind: input, shape index: {}]
  %s1 = inlined_call_operand.vmem [shape: f32[2,1,8], index: 1, kind: input, shape index: {}]
  %s2 = inlined_call_operand.vmem [shape: bf16[2,8,32], index: 2, kind: output, shape index: {}]
  %s3 = sld [smem:[#allocation0]]
  $region41: #{transformer_classifier_forward.15} parent=0
    _
  %s5 = ssub.s32 1, %s3
  %s6 = scalar_select 0, %s5, %s3
  loop: start=0, step=1, limit=4
  $region2: #{transformer_classifier_forward.15} parent=0 // loop_pre_header
    _
  $region3: #{transformer_classifier_forward.15} parent=0 // loop_header
    %s8 = sphi 0, %s12
    %p9 = scmp.ge.s32.totalorder %s8, 4
    %s15 = sphi 0, %s27
    %s16 = sphi 0, %s23
    %s17 = sphi 0, %s15
    %s18 = sphi 0, %s16
    %s19 = sphi 0, %s17
    %s20 = sphi 0, %s18
    %s32 = sphi 0, %s34
    %s35 = sphi 0, %s32
    %s36 = sphi 0, %s35
    %s52 = sphi 0, %s36
    %s58 = sphi 0, %s60
    %s61 = sphi 0, %s58
    %s62 = sphi 0, %s61
    %s78 = sphi 0, %s62
    %s86 = sphi 0, %s88
    %s89 = sphi 0, %s86
    %s90 = sphi 0, %s89
    %s106 = sphi 0, %s90
  $region4: #{transformer_classifier_forward.15} parent=0 // loop_header_branch
    %11 = sbr.rel (%p9) target = $region8
  $region5: #{transformer_classifier_forward.15} parent=0 // loop_body
    %s13 = ssub.s32 %s8, 1
    %s14 = ssub.s32 %s8, 2
    %s21 = sadd.s32 1, %s16
    %p22 = scmp.ge.s32.totalorder %s21, 1
    %s23 = scalar_select %p22, 0, %s21
    %s24 = sadd.s32 1, %s15
    %s25 = scalar_select %p22, %s24, %s15
    %p26 = scmp.ge.s32.totalorder %s25, 2
    %s27 = scalar_select %p26, 0, %s25
    %s28 = ssub.s32 %s15, %s27
    %s29 = ssub.s32 %s16, %s23
    %s30 = sor.u32 %s28, %s29
    %p31 = scmp.eq.s32.totalorder %s30, 0
    %s33 = sadd.s32 %s32, 1
    %s34 = scalar_select %p31, %s32, %s33
    %p37 = pneg %p31
    %p38 = scmp.eq.s32.totalorder %s8, 1
    %p39 = por %p37, %p38
    %p40 = scmp.ne.s32.totalorder %s32, %s35
    %p41 = scmp.eq.s32.totalorder %s8, 0
    %p42 = por %p40, %p41
    %p43 = scmp.ne.s32.totalorder %s32, %s35
    %p44 = scmp.eq.s32.totalorder %s13, 1
    %p45 = por %p43, %p44
    %p46 = scmp.ne.s32.totalorder %s35, %s36
    %p47 = scmp.eq.s32.totalorder %s13, 0
    %p48 = por %p46, %p47
    %p49 = scmp.ne.s32.totalorder %s35, %s36
    %p50 = scmp.eq.s32.totalorder %s14, 1
    %p51 = por %p49, %p50
    %p53 = scmp.ne.s32.totalorder %s36, %s52
    %p54 = scmp.eq.s32.totalorder %s14, 0
    %p55 = por %p53, %p54
    %s56 = ssub.s32 %s15, %s27
    %p57 = scmp.eq.s32.totalorder %s56, 0
    %s59 = sadd.s32 %s58, 1
    %s60 = scalar_select %p57, %s58, %s59
    %p63 = pneg %p57
    %p64 = scmp.eq.s32.totalorder %s8, 1
    %p65 = por %p63, %p64
    %p66 = scmp.ne.s32.totalorder %s58, %s61
    %p67 = scmp.eq.s32.totalorder %s8, 0
    %p68 = por %p66, %p67
    %p69 = scmp.ne.s32.totalorder %s58, %s61
    %p70 = scmp.eq.s32.totalorder %s13, 1
    %p71 = por %p69, %p70
    %p72 = scmp.ne.s32.totalorder %s61, %s62
    %p73 = scmp.eq.s32.totalorder %s13, 0
    %p74 = por %p72, %p73
    %p75 = scmp.ne.s32.totalorder %s61, %s62
    %p76 = scmp.eq.s32.totalorder %s14, 1
    %p77 = por %p75, %p76
    %p79 = scmp.ne.s32.totalorder %s62, %s78
    %p80 = scmp.eq.s32.totalorder %s14, 0
    %p81 = por %p79, %p80
    %s82 = ssub.s32 %s15, %s27
    %s83 = ssub.s32 %s16, %s23
    %s84 = sor.u32 %s82, %s83
    %p85 = scmp.eq.s32.totalorder %s84, 0
    %s87 = sadd.s32 %s86, 1
    %s88 = scalar_select %p85, %s86, %s87
    %p91 = pneg %p85
    %p92 = scmp.eq.s32.totalorder %s8, 1
    %p93 = por %p91, %p92
    %p94 = scmp.ne.s32.totalorder %s86, %s89
    %p95 = scmp.eq.s32.totalorder %s8, 0
    %p96 = por %p94, %p95
    %p97 = scmp.ne.s32.totalorder %s86, %s89
    %p98 = scmp.eq.s32.totalorder %s13, 1
    %p99 = por %p97, %p98
    %p100 = scmp.ne.s32.totalorder %s89, %s90
    %p101 = scmp.eq.s32.totalorder %s13, 0
    %p102 = por %p100, %p101
    %p103 = scmp.ne.s32.totalorder %s89, %s90
    %p104 = scmp.eq.s32.totalorder %s14, 1
    %p105 = por %p103, %p104
    %p107 = scmp.ne.s32.totalorder %s90, %s106
    %p108 = scmp.eq.s32.totalorder %s14, 0
    %p109 = por %p107, %p108
    %p110 = scmp.le.s32.totalorder 1, %s8
    %p111 = scmp.lt.s32.totalorder %s8, 3
    %p112 = pnand %p110, %p111
    %p113 = pneg %p112
    // Predicated region
    $region9: #{transformer_classifier_forward.15} parent=5 // pred_check
      _
    $region10: #{transformer_classifier_forward.15} parent=5 // pred_check_branch
      %115 = sbr.rel (%p112) target = $region12
    $region11: #{transformer_classifier_forward.15} parent=5 // pred_region
      %s116 = ssub.s32 %s8, 1
    $region12: #{transformer_classifier_forward.15} parent=5 // pred_fallthru
      _
    %p117 = scmp.lt.s32.totalorder %s8, 2
    // Predicated region
    $region13: #{transformer_classifier_forward.15} parent=5 // pred_check
      %p118 = pneg %p117
    $region14: #{transformer_classifier_forward.15} parent=5 // pred_check_branch
      %120 = sbr.rel (%p118) target = $region16
    $region15: #{transformer_classifier_forward.15} parent=5 // pred_region
      // Predicated region
      $region17: #{transformer_classifier_forward.15} parent=15 // pred_check
        %p121 = pneg %p42
      $region18: #{transformer_classifier_forward.15} parent=15 // pred_check_branch
        %123 = sbr.rel (%p121) target = $region20
      $region19: #{transformer_classifier_forward.15} parent=15 // pred_region
        %p124 = scmp.lt.s32.totalorder %s15, 1
        %s125 = scalar_select %p124, %s15, 1
        %p126 = scmp.lt.s32.totalorder %s16, 0
        %s127 = scalar_select %p126, %s16, 0
        %s128 = sadd.s32 %s127, %s125
        %s129 = smul.addr %s128, 4
        %s130 = scalar_lea.vmem %s0, %s129
      $region20: #{transformer_classifier_forward.15} parent=15 // pred_fallthru
        _
      // Predicated region
      $region21: #{transformer_classifier_forward.15} parent=15 // pred_check
        %p131 = pneg %p68
      $region22: #{transformer_classifier_forward.15} parent=15 // pred_check_branch
        %133 = sbr.rel (%p131) target = $region24
      $region23: #{transformer_classifier_forward.15} parent=15 // pred_region
        %p134 = scmp.lt.s32.totalorder %s15, 1
        %s135 = scalar_select %p134, %s15, 1
        %s136 = scalar_lea.vmem %s1, %s135
      $region24: #{transformer_classifier_forward.15} parent=15 // pred_fallthru
        _
    $region16: #{transformer_classifier_forward.15} parent=5 // pred_fallthru
      _
    %p137 = scmp.le.s32.totalorder 1, %s8
    %p138 = scmp.lt.s32.totalorder %s8, 3
    %p139 = pnand %p137, %p138
    %p140 = pneg %p139
    // Predicated region
    $region25: #{transformer_classifier_forward.15} parent=5 // pred_check
      _
    $region26: #{transformer_classifier_forward.15} parent=5 // pred_check_branch
      %142 = sbr.rel (%p139) target = $region28
    $region27: #{transformer_classifier_forward.15} parent=5 // pred_region
      %s143 = ssub.s32 %s8, 1
      %p144 = scmp.lt.s32.totalorder %s17, 1
      %s145 = scalar_select %p144, %s17, 1
      %p146 = scmp.lt.s32.totalorder %s18, 0
      %s147 = scalar_select %p146, %s18, 0
      %s148 = sadd.s32 %s147, %s145
      %s149 = smul.addr %s148, 4
      %s150 = scalar_lea.vmem %s0, %s149
      %p151 = pneg %p48
      %p152 = pneg %p45
      %p153 = scmp.lt.s32.totalorder %s17, 1
      %s154 = scalar_select %p153, %s17, 1
      %s155 = scalar_lea.vmem %s1, %s154
      %p156 = pneg %p74
      %p157 = pneg %p71
      %p158 = pneg %p102
      %p159 = pneg %p99
      %p160 = scmp.lt.s32.totalorder %s17, 1
      %s161 = scalar_select %p160, %s17, 1
      %p162 = scmp.lt.s32.totalorder %s18, 0
      %s163 = scalar_select %p162, %s18, 0
      %s164 = sadd.s32 %s163, %s161
      %s165 = smul.addr %s164, 4
      %s166 = scalar_lea.vmem %s2, %s165
      %p167 = scmp.lt.s32.totalorder %s17, 1
      %s168 = scalar_select %p167, %s17, 1
      %p169 = scmp.lt.s32.totalorder %s18, 0
      %s170 = scalar_select %p169, %s18, 0
      %s171 = sadd.s32 %s170, %s168
      %s172 = smul.addr %s171, 4
      %s173 = scalar_lea.vmem %s0, %s172
      %p174 = scmp.lt.s32.totalorder %s17, 1
      %s175 = scalar_select %p174, %s17, 1
      %s176 = scalar_lea.vmem %s1, %s175
      %p177 = scmp.lt.s32.totalorder %s17, 1
      %s178 = scalar_select %p177, %s17, 1
      %p179 = scmp.lt.s32.totalorder %s18, 0
      %s180 = scalar_select %p179, %s18, 0
      %s181 = sadd.s32 %s180, %s178
      %s182 = smul.addr %s181, 4
      %s183 = scalar_lea.vmem %s2, %s182
      %v185 = vld [vmem:[%s176] sm:$0x1]
      %v186 = vld [vmem:[%s173] sm:$0xf]
      %v187 = vunpack.c.l.bf16 %v186
      %v188 = vmul.f32 %v187, 0.25
      %v189 = vpack.c.bf16 %v188, %v188
      %v191 = vperm.slane %v185, 0
      %v194 = vunpack.c.l.b16 %v186
      %v195 = vpack.c.b16 %v194, %v194
      %196 = vrot.lane.b32.xlu0 %v195, 96
      %v197 = vpop.permute.xlu0 %196
      %vm198 = vcmask 130048
      %v200 = vsel %vm198, %v189, 0
      %v203 = vsel %vm198, %v197, 0
      %205 = vmatpush.bf16.xpose.msra.mxu0 0
      %206 = vmatpush.bf16.xpose.msra.mxu0 0
      %207 = vmatpush.bf16.xpose.msra.mxu0 0
      %208 = vmatpush.bf16.xpose.msra.mxu0 0
      %209 = vmatpush.bf16.xpose.msra.mxu0 0
      %210 = vmatpush.bf16.xpose.msra.mxu0 0
      %211 = vmatpush.bf16.xpose.msra.mxu0 0
      %212 = vmatpush.bf16.xpose.msra.mxu0 %v203
      %213 = vmatmul.bf16.gmra.mxu0 %v200
      %v214 = vpop.f32.mrf.mxu0
      %v215 = vadd.f32 %v191, %v214
      %v216 = vpop.f32.mrf.mxu0
      %217 = vdwg.mxu0
      %vm218 = vcmask 64512
      %v219 = vsel %vm218, %v215, -inf
      %220 = vmax.xlane.f32.xlu0 %v219
      %v221 = vpop.xlane.xlu0 %220
      %v222 = vsub.f32 %v215, %v221
      %v223 = vmul.f32 %v222, 1.442695
      %v224 = vpow.pop %v223
      %v225 = vsel %vm218, %v224, 0.0
      %226 = vadd.xlane.f32.xlu0 %v225
      %v227 = vpop.xlane.xlu0 %226
      %v228 = vrcp.pop %v227
      %v229 = vmul.f32 %v224, %v228
      %v230 = vpack.c.bf16 %v229, %v229
      %231 = vrot.lane.b32.xlu0 %v195, 64
      %v232 = vpop.permute.xlu0 %231
      %v234 = vsel %vm218, %v230, 0
      %vm236 = vcmask 1043456
      %v238 = vsel %vm236, %v232, 0
      %240 = vmatpush.bf16.msra.mxu0 0
      %241 = vmatpush.bf16.msra.mxu0 0
      %242 = vmatpush.bf16.msra.mxu0 0
      %243 = vmatpush.bf16.msra.mxu0 0
      %244 = vmatpush.bf16.msra.mxu0 0
      %245 = vmatpush.bf16.msra.mxu0 0
      %246 = vmatpush.bf16.msra.mxu0 0
      %247 = vmatpush.bf16.msra.mxu0 %v238
      %248 = vmatmul.bf16.gmra.mxu0 %v234
      %v249 = vpop.f32.mrf.mxu0
      %v250 = vadd.f32 0.0, %v249
      %v251 = vpop.f32.mrf.mxu0
      %252 = vdwg.mxu0
      %254 = vrot.lane.b32.xlu0 %v189, 112
      %v255 = vpop.permute.xlu0 %254
      %256 = vrot.lane.b32.xlu0 %v195, 80
      %v257 = vpop.permute.xlu0 %256
      %v259 = vsel %vm198, %v255, 0
      %v262 = vsel %vm198, %v257, 0
      %264 = vmatpush.bf16.xpose.msra.mxu0 0
      %265 = vmatpush.bf16.xpose.msra.mxu0 0
      %266 = vmatpush.bf16.xpose.msra.mxu0 0
      %267 = vmatpush.bf16.xpose.msra.mxu0 0
      %268 = vmatpush.bf16.xpose.msra.mxu0 0
      %269 = vmatpush.bf16.xpose.msra.mxu0 0
      %270 = vmatpush.bf16.xpose.msra.mxu0 0
      %271 = vmatpush.bf16.xpose.msra.mxu0 %v262
      %272 = vmatmul.bf16.gmra.mxu0 %v259
      %v273 = vpop.f32.mrf.mxu0
      %v274 = vadd.f32 %v191, %v273
      %v275 = vpop.f32.mrf.mxu0
      %276 = vdwg.mxu0
      %v277 = vsel %vm218, %v274, -inf
      %278 = vmax.xlane.f32.xlu0 %v277
      %v279 = vpop.xlane.xlu0 %278
      %v280 = vsub.f32 %v274, %v279
      %v281 = vmul.f32 %v280, 1.442695
      %v282 = vpow.pop %v281
      %v283 = vsel %vm218, %v282, 0.0
      %284 = vadd.xlane.f32.xlu0 %v283
      %v285 = vpop.xlane.xlu0 %284
      %v286 = vrcp.pop %v285
      %v287 = vmul.f32 %v282, %v286
      %v288 = vpack.c.bf16 %v287, %v287
      %289 = vrot.lane.b32.xlu0 %v195, 48
      %v290 = vpop.permute.xlu0 %289
      %v292 = vsel %vm218, %v288, 0
      %v295 = vsel %vm236, %v290, 0
      %297 = vmatpush.bf16.msra.mxu0 0
      %298 = vmatpush.bf16.msra.mxu0 0
      %299 = vmatpush.bf16.msra.mxu0 0
      %300 = vmatpush.bf16.msra.mxu0 0
      %301 = vmatpush.bf16.msra.mxu0 0
      %302 = vmatpush.bf16.msra.mxu0 0
      %303 = vmatpush.bf16.msra.mxu0 0
      %304 = vmatpush.bf16.msra.mxu0 %v295
      %305 = vmatmul.bf16.gmra.mxu0 %v292
      %v306 = vpop.f32.mrf.mxu0
      %v307 = vadd.f32 0.0, %v306
      %v308 = vpop.f32.mrf.mxu0
      %309 = vdwg.mxu0
      %311 = vrot.lane.b32.xlu0 %v307, 16
      %v312 = vpop.permute.xlu0 %311
      %v314 = vsel %vm198, %v250, %v312
      %v315 = vpack.c.bf16 %v314, %v314
      %vm316 = vcmask 257024
      %317 = vst.msk [vmem:[%s183] sm:$0xf] %vm316, %v315
      %p318 = scmp.lt.s32.totalorder %s17, 1
      %s319 = scalar_select %p318, %s17, 1
      %p320 = scmp.lt.s32.totalorder %s18, 0
      %s321 = scalar_select %p320, %s18, 0
      %s322 = sadd.s32 %s321, %s319
      %s323 = smul.addr %s322, 4
      %s324 = scalar_lea.vmem %s2, %s323
      // Predicated region
      $region29: #{transformer_classifier_forward.15} parent=27 // pred_check
        %p325 = pneg %p99
      $region30: #{transformer_classifier_forward.15} parent=27 // pred_check_branch
        %327 = sbr.rel (%p325) target = $region32
      $region31: #{transformer_classifier_forward.15} parent=27 // pred_region
        _
      $region32: #{transformer_classifier_forward.15} parent=27 // pred_fallthru
        _
    $region28: #{transformer_classifier_forward.15} parent=5 // pred_fallthru
      _
    %p328 = scmp.le.s32.totalorder 2, %s8
    // Predicated region
    $region33: #{transformer_classifier_forward.15} parent=5 // pred_check
      %p329 = pneg %p328
    $region34: #{transformer_classifier_forward.15} parent=5 // pred_check_branch
      %331 = sbr.rel (%p329) target = $region36
    $region35: #{transformer_classifier_forward.15} parent=5 // pred_region
      %s332 = ssub.s32 %s8, 2
      // Predicated region
      $region37: #{transformer_classifier_forward.15} parent=35 // pred_check
        %p333 = pneg %p105
      $region38: #{transformer_classifier_forward.15} parent=35 // pred_check_branch
        %335 = sbr.rel (%p333) target = $region40
      $region39: #{transformer_classifier_forward.15} parent=35 // pred_region
        %p336 = scmp.lt.s32.totalorder %s19, 1
        %s337 = scalar_select %p336, %s19, 1
        %p338 = scmp.lt.s32.totalorder %s20, 0
        %s339 = scalar_select %p338, %s20, 0
        %s340 = sadd.s32 %s339, %s337
        %s341 = smul.addr %s340, 4
        %s342 = scalar_lea.vmem %s2, %s341
      $region40: #{transformer_classifier_forward.15} parent=35 // pred_fallthru
        _
    $region36: #{transformer_classifier_forward.15} parent=5 // pred_fallthru
      _
  $region6: #{transformer_classifier_forward.15} parent=0 // loop_footer
    %s12 = sadd.s32 1, %s8
  $region7: #{transformer_classifier_forward.15} parent=0 // loop_footer_branch
    %7 = sbr.rel target = $region3
  $region8: #{transformer_classifier_forward.15} parent=0 // loop_exit
    _

// kernel: transformer_classifier_forward.24
$region0: #{transformer_classifier_forward.24}
  #allocation0 [shape = 'u32[]', space=smem, size = 0x4, offset = 0x4, fixed_abs, tag = 'smem constant byte address 0x4 - core index']
  #allocation1 [shape = 'u32[72,128]{1,0:T(1,128)}', space=vmem, size = 0x9000, scoped, tag = 'internal scratch']
  %s0 = inlined_call_operand.vmem [shape: bf16[2,32], index: 0, kind: input, shape index: {}]
  %s1 = inlined_call_operand.vmem [shape: f32[1,32], index: 1, kind: input, shape index: {}]
  %s2 = inlined_call_operand.vmem [shape: f32[1,32], index: 2, kind: input, shape index: {}]
  %s3 = inlined_call_operand.vmem [shape: bf16[2,32], index: 3, kind: output, shape index: {}]
  %s4 = sld [smem:[#allocation0]]
  $region22: #{transformer_classifier_forward.24} parent=0
    _
  %s6 = ssub.s32 1, %s4
  %s7 = scalar_select 0, %s6, %s4
  // Predicated region
  $region2: #{transformer_classifier_forward.24} parent=0 // pred_check
    _
  $region3: #{transformer_classifier_forward.24} parent=0 // pred_check_branch
    %9 = sbr.rel (0) target = $region5
  $region4: #{transformer_classifier_forward.24} parent=0 // pred_region
    _
  $region5: #{transformer_classifier_forward.24} parent=0 // pred_fallthru
    _
  // Predicated region
  $region6: #{transformer_classifier_forward.24} parent=0 // pred_check
    _
  $region7: #{transformer_classifier_forward.24} parent=0 // pred_check_branch
    %11 = sbr.rel (0) target = $region9
  $region8: #{transformer_classifier_forward.24} parent=0 // pred_region
    _
  $region9: #{transformer_classifier_forward.24} parent=0 // pred_fallthru
    _
  // Predicated region
  $region10: #{transformer_classifier_forward.24} parent=0 // pred_check
    _
  $region11: #{transformer_classifier_forward.24} parent=0 // pred_check_branch
    %13 = sbr.rel (0) target = $region13
  $region12: #{transformer_classifier_forward.24} parent=0 // pred_region
    _
  $region13: #{transformer_classifier_forward.24} parent=0 // pred_fallthru
    _
  %v14 = vld [vmem:[%s0] sm:$0x1]
  %v15 = vunpack.c.l.bf16 %v14
  %vm16 = vcmask 254976
  %v17 = vsel %vm16, %v15, 0.0
  %18 = vadd.xlane.f32.xlu0 %v17
  %v19 = vpop.xlane.xlu0 %18
  %v20 = vrcp.pop 32.0
  %v21 = vmul.f32 32.0, %v20
  %v22 = vsub.f32 1.0, %v21
  %v23 = vmul.f32 %v20, %v22
  %v24 = vadd.f32 %v20, %v23
  %vm25 = vweird.f32 %v20
  %v26 = vsel %vm25, %v20, %v24
  %v27 = vmul.f32 %v19, %v26
  %v28 = vsub.f32 %v15, %v27
  %v29 = vmul.f32 %v28, %v28
  %v30 = vsel %vm16, %v29, 0.0
  %31 = vadd.xlane.f32.xlu0 %v30
  %v32 = vpop.xlane.xlu0 %31
  %v33 = vmul.f32 %v32, %v26
  %v34 = vadd.f32 %v33, 1e-05
  %v35 = vrsqrt.pop %v34
  %v36 = vmul.f32 %v35, %v34
  %v37 = vmul.f32 %v36, %v35
  %v38 = vmul.f32 0.5, %v37
  %v39 = vsub.f32 1.5, %v38
  %v40 = vmul.f32 %v35, %v39
  %vm41 = vweird.f32 %v34
  %vm42 = vweird.f32 %v35
  %vm43 = vmor %vm41, %vm42
  %v44 = vsel %vm43, %v35, %v40
  %v45 = vmul.f32 %v28, %v44
  %v46 = vld [vmem:[%s1] sm:$0x1]
  %v48 = vperm.slane %v46, 0
  %v50 = vmul.f32 %v45, %v48
  %v51 = vld [vmem:[%s2] sm:$0x1]
  %v53 = vperm.slane %v51, 0
  %v55 = vadd.f32 %v50, %v53
  %v56 = vpack.c.bf16 %v55, %v55
  %vm57 = vcmask 253952
  %58 = vst.msk [vmem:[%s3] sm:$0x1] %vm57, %v56
  // Predicated region
  $region14: #{transformer_classifier_forward.24} parent=0 // pred_check
    _
  $region15: #{transformer_classifier_forward.24} parent=0 // pred_check_branch
    %60 = sbr.rel (0) target = $region17
  $region16: #{transformer_classifier_forward.24} parent=0 // pred_region
    _
  $region17: #{transformer_classifier_forward.24} parent=0 // pred_fallthru
    _
  // Predicated region
  $region18: #{transformer_classifier_forward.24} parent=0 // pred_check
    _
  $region19: #{transformer_classifier_forward.24} parent=0 // pred_check_branch
    %62 = sbr.rel (0) target = $region21
  $region20: #{transformer_classifier_forward.24} parent=0 // pred_region
    _
  $region21: #{transformer_classifier_forward.24} parent=0 // pred_fallthru
    _

// kernel: transformer_classifier_forward.17
$region0: #{transformer_classifier_forward.17}
  #allocation0 [shape = 'u32[]', space=smem, size = 0x4, offset = 0x4, fixed_abs, tag = 'smem constant byte address 0x4 - core index']
  #allocation1 [shape = 'u32[72,128]{1,0:T(1,128)}', space=vmem, size = 0x9000, scoped, tag = 'internal scratch']
  #allocation2 [shape = 'f32[16,64]{1,0:T(8,128)}', space=vmem, size = 0x2000, scoped, tag = 'scratch operand']
  %s0 = inlined_call_operand.vmem [shape: bf16[16,32], index: 0, kind: input, shape index: {}]
  %s1 = inlined_call_operand.vmem [shape: bf16[32,64], index: 1, kind: input, shape index: {}]
  %s2 = inlined_call_operand.vmem [shape: f32[1,64], index: 2, kind: input, shape index: {}]
  %s3 = inlined_call_operand.vmem [shape: bf16[16,64], index: 3, kind: output, shape index: {}]
  %s4 = sld [smem:[#allocation0]]
  $region30: #{transformer_classifier_forward.17} parent=0
    _
  %s6 = ssub.s32 1, %s4
  %s7 = scalar_select 0, %s6, %s4
  // Predicated region
  $region2: #{transformer_classifier_forward.17} parent=0 // pred_check
    _
  $region3: #{transformer_classifier_forward.17} parent=0 // pred_check_branch
    %9 = sbr.rel (0) target = $region5
  $region4: #{transformer_classifier_forward.17} parent=0 // pred_region
    _
  $region5: #{transformer_classifier_forward.17} parent=0 // pred_fallthru
    _
  // Predicated region
  $region6: #{transformer_classifier_forward.17} parent=0 // pred_check
    _
  $region7: #{transformer_classifier_forward.17} parent=0 // pred_check_branch
    %11 = sbr.rel (0) target = $region9
  $region8: #{transformer_classifier_forward.17} parent=0 // pred_region
    _
  $region9: #{transformer_classifier_forward.17} parent=0 // pred_fallthru
    _
  // Predicated region
  $region10: #{transformer_classifier_forward.17} parent=0 // pred_check
    _
  $region11: #{transformer_classifier_forward.17} parent=0 // pred_check_branch
    %13 = sbr.rel (0) target = $region13
  $region12: #{transformer_classifier_forward.17} parent=0 // pred_region
    _
  $region13: #{transformer_classifier_forward.17} parent=0 // pred_fallthru
    _
  %p15 = scmp.eq.s32.totalorder 0, 0
  // Predicated region
  $region14: #{transformer_classifier_forward.17} parent=0 // pred_check
    %p16 = pneg %p15
  $region15: #{transformer_classifier_forward.17} parent=0 // pred_check_branch
    %18 = sbr.rel (%p16) target = $region17
  $region16: #{transformer_classifier_forward.17} parent=0 // pred_region
    %vm19 = vcmask 523264
    %20 = vst.msk [vmem:[#allocation2] sm:$0xff] %vm19, 0.0
    %21 = vst.msk [vmem:[#allocation2 + $0x8] sm:$0xff] %vm19, 0.0
  $region17: #{transformer_classifier_forward.17} parent=0 // pred_fallthru
    _
  %v22 = vld [vmem:[#allocation2] sm:$0xff]
  %v23 = vld [vmem:[#allocation2 + $0x8] sm:$0xff]
  %v24 = vld [vmem:[%s0] sm:$0xf]
  %v25 = vld [vmem:[%s0 + $0x4] sm:$0xf]
  %v26 = vld [vmem:[%s1] sm:$0xf]
  %v27 = vld [vmem:[%s1 + $0x4] sm:$0xf]
  %v28 = vld [vmem:[%s1 + $0x8] sm:$0xf]
  %v29 = vld [vmem:[%s1 + $0xc] sm:$0xf]
  %v32 = vunpack.c.l.b16 %v24
  %v33 = vunpack.c.l.b16 %v25
  %v34 = vpack.c.b16 %v33, %v32
  %v39 = vunpack.c.l.b16 %v26
  %v40 = vunpack.c.l.b16 %v27
  %v41 = vunpack.c.l.b16 %v28
  %v42 = vunpack.c.l.b16 %v29
  %v43 = vpack.c.b16 %v40, %v39
  %v44 = vpack.c.b16 %v42, %v41
  %vm47 = vcmask 261120
  %v49 = vsel %vm47, %v34, 0
  %51 = vmatpush.bf16.msra.mxu0 0
  %52 = vmatpush.bf16.msra.mxu0 0
  %53 = vmatpush.bf16.msra.mxu0 0
  %54 = vmatpush.bf16.msra.mxu0 0
  %55 = vmatpush.bf16.msra.mxu0 0
  %56 = vmatpush.bf16.msra.mxu0 0
  %57 = vmatpush.bf16.msra.mxu0 %v44
  %58 = vmatpush.bf16.msra.mxu0 %v43
  %59 = vmatmul.bf16.gmra.mxu0 %v49
  %v60 = vpop.f32.mrf.mxu0
  %v61 = vadd.f32 0.0, %v60
  %v62 = vpop.f32.mrf.mxu0
  %v63 = vadd.f32 0.0, %v62
  %64 = vdwg.mxu0
  %v65 = vadd.f32 %v22, %v61
  %v66 = vadd.f32 %v23, %v63
  %vm67 = vcmask 523264
  %68 = vst.msk [vmem:[#allocation2] sm:$0xff] %vm67, %v65
  %69 = vst.msk [vmem:[#allocation2 + $0x8] sm:$0xff] %vm67, %v66
  // Predicated region
  $region18: #{transformer_classifier_forward.17} parent=0 // pred_check
    %p70 = pneg %p15
  $region19: #{transformer_classifier_forward.17} parent=0 // pred_check_branch
    %72 = sbr.rel (%p70) target = $region21
  $region20: #{transformer_classifier_forward.17} parent=0 // pred_region
    %v73 = vld [vmem:[#allocation2] sm:$0xff]
    %v74 = vld [vmem:[#allocation2 + $0x8] sm:$0xff]
    %v75 = vld [vmem:[%s2] sm:$0x1]
    %v77 = vperm.slane %v75, 0
    %v79 = vadd.f32 %v73, %v77
    %v80 = vadd.f32 %v74, %v77
    %v81 = vmul.f32 %v79, %v79
    %v82 = vmul.f32 %v80, %v80
    %v83 = vmul.f32 %v79, %v81
    %v84 = vmul.f32 %v80, %v82
    %v85 = vmul.f32 %v83, 0.044715
    %v86 = vmul.f32 %v84, 0.044715
    %v87 = vadd.f32 %v79, %v85
    %v88 = vadd.f32 %v80, %v86
    %v89 = vmul.f32 %v87, 0.7978846
    %v90 = vmul.f32 %v88, 0.7978846
    %v91 = vtanh.pop %v89
    %v92 = vtanh.pop %v90
    %v93 = vadd.f32 %v91, 1.0
    %v94 = vadd.f32 %v92, 1.0
    %v95 = vmul.f32 %v93, 0.5
    %v96 = vmul.f32 %v94, 0.5
    %v97 = vmul.f32 %v79, %v95
    %v98 = vmul.f32 %v80, %v96
    %v99 = vpack.c.bf16 %v97, %v97
    %v100 = vpack.c.bf16 %v98, %v98
    %vm101 = vcmask 519168
    %102 = vst.msk [vmem:[%s3] sm:$0xf] %vm101, %v99
    %103 = vst.msk [vmem:[%s3 + $0x4] sm:$0xf] %vm101, %v100
  $region21: #{transformer_classifier_forward.17} parent=0 // pred_fallthru
    _
  // Predicated region
  $region22: #{transformer_classifier_forward.17} parent=0 // pred_check
    _
  $region23: #{transformer_classifier_forward.17} parent=0 // pred_check_branch
    %105 = sbr.rel (0) target = $region25
  $region24: #{transformer_classifier_forward.17} parent=0 // pred_region
    _
  $region25: #{transformer_classifier_forward.17} parent=0 // pred_fallthru
    _
  // Predicated region
  $region26: #{transformer_classifier_forward.17} parent=0 // pred_check
    _
  $region27: #{transformer_classifier_forward.17} parent=0 // pred_check_branch
    %107 = sbr.rel (0) target = $region29
  $region28: #{transformer_classifier_forward.17} parent=0 // pred_region
    _
  $region29: #{transformer_classifier_forward.17} parent=0 // pred_fallthru
    _

// kernel: transformer_classifier_forward.18
$region0: #{transformer_classifier_forward.18}
  #allocation0 [shape = 'u32[]', space=smem, size = 0x4, offset = 0x4, fixed_abs, tag = 'smem constant byte address 0x4 - core index']
  #allocation1 [shape = 'u32[72,128]{1,0:T(1,128)}', space=vmem, size = 0x9000, scoped, tag = 'internal scratch']
  #allocation2 [shape = 'f32[16,32]{1,0:T(8,128)}', space=vmem, size = 0x2000, scoped, tag = 'scratch operand']
  %s0 = inlined_call_operand.vmem [shape: bf16[16,64], index: 0, kind: input, shape index: {}]
  %s1 = inlined_call_operand.vmem [shape: bf16[64,32], index: 1, kind: input, shape index: {}]
  %s2 = inlined_call_operand.vmem [shape: f32[1,32], index: 2, kind: input, shape index: {}]
  %s3 = inlined_call_operand.vmem [shape: bf16[16,32], index: 3, kind: input, shape index: {}]
  %s4 = inlined_call_operand.vmem [shape: f32[1,32], index: 4, kind: input, shape index: {}]
  %s5 = inlined_call_operand.vmem [shape: f32[1,32], index: 5, kind: input, shape index: {}]
  %s6 = inlined_call_operand.vmem [shape: bf16[16,32], index: 6, kind: output, shape index: {}]
  %s7 = sld [smem:[#allocation0]]
  $region42: #{transformer_classifier_forward.18} parent=0
    _
  %s9 = ssub.s32 1, %s7
  %s10 = scalar_select 0, %s9, %s7
  // Predicated region
  $region2: #{transformer_classifier_forward.18} parent=0 // pred_check
    _
  $region3: #{transformer_classifier_forward.18} parent=0 // pred_check_branch
    %12 = sbr.rel (0) target = $region5
  $region4: #{transformer_classifier_forward.18} parent=0 // pred_region
    _
  $region5: #{transformer_classifier_forward.18} parent=0 // pred_fallthru
    _
  // Predicated region
  $region6: #{transformer_classifier_forward.18} parent=0 // pred_check
    _
  $region7: #{transformer_classifier_forward.18} parent=0 // pred_check_branch
    %14 = sbr.rel (0) target = $region9
  $region8: #{transformer_classifier_forward.18} parent=0 // pred_region
    _
  $region9: #{transformer_classifier_forward.18} parent=0 // pred_fallthru
    _
  // Predicated region
  $region10: #{transformer_classifier_forward.18} parent=0 // pred_check
    _
  $region11: #{transformer_classifier_forward.18} parent=0 // pred_check_branch
    %16 = sbr.rel (0) target = $region13
  $region12: #{transformer_classifier_forward.18} parent=0 // pred_region
    _
  $region13: #{transformer_classifier_forward.18} parent=0 // pred_fallthru
    _
  // Predicated region
  $region14: #{transformer_classifier_forward.18} parent=0 // pred_check
    _
  $region15: #{transformer_classifier_forward.18} parent=0 // pred_check_branch
    %18 = sbr.rel (0) target = $region17
  $region16: #{transformer_classifier_forward.18} parent=0 // pred_region
    _
  $region17: #{transformer_classifier_forward.18} parent=0 // pred_fallthru
    _
  // Predicated region
  $region18: #{transformer_classifier_forward.18} parent=0 // pred_check
    _
  $region19: #{transformer_classifier_forward.18} parent=0 // pred_check_branch
    %20 = sbr.rel (0) target = $region21
  $region20: #{transformer_classifier_forward.18} parent=0 // pred_region
    _
  $region21: #{transformer_classifier_forward.18} parent=0 // pred_fallthru
    _
  // Predicated region
  $region22: #{transformer_classifier_forward.18} parent=0 // pred_check
    _
  $region23: #{transformer_classifier_forward.18} parent=0 // pred_check_branch
    %22 = sbr.rel (0) target = $region25
  $region24: #{transformer_classifier_forward.18} parent=0 // pred_region
    _
  $region25: #{transformer_classifier_forward.18} parent=0 // pred_fallthru
    _
  %p24 = scmp.eq.s32.totalorder 0, 0
  // Predicated region
  $region26: #{transformer_classifier_forward.18} parent=0 // pred_check
    %p25 = pneg %p24
  $region27: #{transformer_classifier_forward.18} parent=0 // pred_check_branch
    %27 = sbr.rel (%p25) target = $region29
  $region28: #{transformer_classifier_forward.18} parent=0 // pred_region
    %vm28 = vcmask 261120
    %29 = vst.msk [vmem:[#allocation2] sm:$0xff] %vm28, 0.0
    %30 = vst.msk [vmem:[#allocation2 + $0x8] sm:$0xff] %vm28, 0.0
  $region29: #{transformer_classifier_forward.18} parent=0 // pred_fallthru
    _
  %v31 = vld [vmem:[#allocation2] sm:$0xff]
  %v32 = vld [vmem:[#allocation2 + $0x8] sm:$0xff]
  %v33 = vld [vmem:[%s0] sm:$0xf]
  %v34 = vld [vmem:[%s0 + $0x4] sm:$0xf]
  %v35 = vld [vmem:[%s1] sm:$0xf]
  %v36 = vld [vmem:[%s1 + $0x4] sm:$0xf]
  %v37 = vld [vmem:[%s1 + $0x8] sm:$0xf]
  %v38 = vld [vmem:[%s1 + $0xc] sm:$0xf]
  %v39 = vld [vmem:[%s1 + $0x10] sm:$0xf]
  %v40 = vld [vmem:[%s1 + $0x14] sm:$0xf]
  %v41 = vld [vmem:[%s1 + $0x18] sm:$0xf]
  %v42 = vld [vmem:[%s1 + $0x1c] sm:$0xf]
  %v45 = vunpack.c.l.b16 %v33
  %v46 = vunpack.c.l.b16 %v34
  %v47 = vpack.c.b16 %v46, %v45
  %v56 = vunpack.c.l.b16 %v35
  %v57 = vunpack.c.l.b16 %v36
  %v58 = vunpack.c.l.b16 %v37
  %v59 = vunpack.c.l.b16 %v38
  %v60 = vunpack.c.l.b16 %v39
  %v61 = vunpack.c.l.b16 %v40
  %v62 = vunpack.c.l.b16 %v41
  %v63 = vunpack.c.l.b16 %v42
  %v64 = vpack.c.b16 %v57, %v56
  %v65 = vpack.c.b16 %v59, %v58
  %v66 = vpack.c.b16 %v61, %v60
  %v67 = vpack.c.b16 %v63, %v62
  %vm72 = vcmask 523264
  %v74 = vsel %vm72, %v47, 0
  %76 = vmatpush.bf16.msra.mxu0 0
  %77 = vmatpush.bf16.msra.mxu0 0
  %78 = vmatpush.bf16.msra.mxu0 0
  %79 = vmatpush.bf16.msra.mxu0 0
  %80 = vmatpush.bf16.msra.mxu0 %v67
  %81 = vmatpush.bf16.msra.mxu0 %v66
  %82 = vmatpush.bf16.msra.mxu0 %v65
  %83 = vmatpush.bf16.msra.mxu0 %v64
  %84 = vmatmul.bf16.gmra.mxu0 %v74
  %v85 = vpop.f32.mrf.mxu0
  %v86 = vadd.f32 0.0, %v85
  %v87 = vpop.f32.mrf.mxu0
  %v88 = vadd.f32 0.0, %v87
  %89 = vdwg.mxu0
  %v90 = vadd.f32 %v31, %v86
  %v91 = vadd.f32 %v32, %v88
  %vm92 = vcmask 261120
  %93 = vst.msk [vmem:[#allocation2] sm:$0xff] %vm92, %v90
  %94 = vst.msk [vmem:[#allocation2 + $0x8] sm:$0xff] %vm92, %v91
  // Predicated region
  $region30: #{transformer_classifier_forward.18} parent=0 // pred_check
    %p95 = pneg %p24
  $region31: #{transformer_classifier_forward.18} parent=0 // pred_check_branch
    %97 = sbr.rel (%p95) target = $region33
  $region32: #{transformer_classifier_forward.18} parent=0 // pred_region
    %v98 = vld [vmem:[#allocation2] sm:$0xff]
    %v99 = vld [vmem:[#allocation2 + $0x8] sm:$0xff]
    %v100 = vld [vmem:[%s2] sm:$0x1]
    %v102 = vperm.slane %v100, 0
    %v104 = vadd.f32 %v98, %v102
    %v105 = vadd.f32 %v99, %v102
    %v106 = vld [vmem:[%s3] sm:$0xf]
    %v107 = vld [vmem:[%s3 + $0x4] sm:$0xf]
    %v108 = vunpack.c.l.bf16 %v106
    %v109 = vunpack.c.l.bf16 %v107
    %v110 = vadd.f32 %v104, %v108
    %v111 = vadd.f32 %v105, %v109
    %v112 = vsel %vm92, %v110, 0.0
    %113 = vadd.xlane.f32.xlu0 %v112
    %v114 = vpop.xlane.xlu0 %113
    %v115 = vsel %vm92, %v111, 0.0
    %116 = vadd.xlane.f32.xlu0 %v115
    %v117 = vpop.xlane.xlu0 %116
    %v118 = vrcp.pop 32.0
    %v119 = vmul.f32 32.0, %v118
    %v120 = vsub.f32 1.0, %v119
    %v121 = vmul.f32 %v118, %v120
    %v122 = vadd.f32 %v118, %v121
    %vm123 = vweird.f32 %v118
    %v124 = vsel %vm123, %v118, %v122
    %v125 = vmul.f32 %v114, %v124
    %v126 = vmul.f32 %v117, %v124
    %v127 = vsub.f32 %v110, %v125
    %v128 = vsub.f32 %v111, %v126
    %v129 = vmul.f32 %v127, %v127
    %v130 = vmul.f32 %v128, %v128
    %v131 = vsel %vm92, %v129, 0.0
    %132 = vadd.xlane.f32.xlu0 %v131
    %v133 = vpop.xlane.xlu0 %132
    %v134 = vsel %vm92, %v130, 0.0
    %135 = vadd.xlane.f32.xlu0 %v134
    %v136 = vpop.xlane.xlu0 %135
    %v137 = vmul.f32 %v133, %v124
    %v138 = vmul.f32 %v136, %v124
    %v139 = vadd.f32 %v137, 1e-12
    %v140 = vadd.f32 %v138, 1e-12
    %v141 = vrsqrt.pop %v139
    %v142 = vmul.f32 %v141, %v139
    %v143 = vmul.f32 %v142, %v141
    %v144 = vmul.f32 0.5, %v143
    %v145 = vsub.f32 1.5, %v144
    %v146 = vmul.f32 %v141, %v145
    %vm147 = vweird.f32 %v139
    %vm148 = vweird.f32 %v141
    %vm149 = vmor %vm147, %vm148
    %v150 = vsel %vm149, %v141, %v146
    %v151 = vrsqrt.pop %v140
    %v152 = vmul.f32 %v151, %v140
    %v153 = vmul.f32 %v152, %v151
    %v154 = vmul.f32 0.5, %v153
    %v155 = vsub.f32 1.5, %v154
    %v156 = vmul.f32 %v151, %v155
    %vm157 = vweird.f32 %v140
    %vm158 = vweird.f32 %v151
    %vm159 = vmor %vm157, %vm158
    %v160 = vsel %vm159, %v151, %v156
    %v161 = vmul.f32 %v127, %v150
    %v162 = vmul.f32 %v128, %v160
    %v163 = vld [vmem:[%s4] sm:$0x1]
    %v165 = vperm.slane %v163, 0
    %v167 = vmul.f32 %v161, %v165
    %v168 = vmul.f32 %v162, %v165
    %v169 = vld [vmem:[%s5] sm:$0x1]
    %v171 = vperm.slane %v169, 0
    %v173 = vadd.f32 %v167, %v171
    %v174 = vadd.f32 %v168, %v171
    %v175 = vpack.c.bf16 %v173, %v173
    %v176 = vpack.c.bf16 %v174, %v174
    %vm177 = vcmask 257024
    %178 = vst.msk [vmem:[%s6] sm:$0xf] %vm177, %v175
    %179 = vst.msk [vmem:[%s6 + $0x4] sm:$0xf] %vm177, %v176
  $region33: #{transformer_classifier_forward.18} parent=0 // pred_fallthru
    _
  // Predicated region
  $region34: #{transformer_classifier_forward.18} parent=0 // pred_check
    _
  $region35: #{transformer_classifier_forward.18} parent=0 // pred_check_branch
    %181 = sbr.rel (0) target = $region37
  $region36: #{transformer_classifier_forward.18} parent=0 // pred_region
    _
  $region37: #{transformer_classifier_forward.18} parent=0 // pred_fallthru
    _
  // Predicated region
  $region38: #{transformer_classifier_forward.18} parent=0 // pred_check
    _
  $region39: #{transformer_classifier_forward.18} parent=0 // pred_check_branch
    %183 = sbr.rel (0) target = $region41
  $region40: #{transformer_classifier_forward.18} parent=0 // pred_region
    _
  $region41: #{transformer_classifier_forward.18} parent=0 // pred_fallthru
    _

// kernel: transformer_classifier_forward.25
$region0: #{transformer_classifier_forward.25}
  #allocation0 [shape = 'u32[]', space=smem, size = 0x4, offset = 0x4, fixed_abs, tag = 'smem constant byte address 0x4 - core index']
  #allocation1 [shape = 'u32[72,128]{1,0:T(1,128)}', space=vmem, size = 0x9000, scoped, tag = 'internal scratch']
  #allocation2 [shape = 'f32[2,4]{1,0:T(2,128)}', space=vmem, size = 0x400, scoped, tag = 'scratch operand']
  %s0 = inlined_call_operand.vmem [shape: bf16[2,32], index: 0, kind: input, shape index: {}]
  %s1 = inlined_call_operand.vmem [shape: bf16[32,4], index: 1, kind: input, shape index: {}]
  %s2 = inlined_call_operand.vmem [shape: f32[1,4], index: 2, kind: input, shape index: {}]
  %s3 = inlined_call_operand.hbm [shape: f32[2,4], index: 3, kind: output, shape index: {}]
  %s4 = sld [smem:[#allocation0]]
  $region30: #{transformer_classifier_forward.25} parent=0
    _
  %s6 = ssub.s32 1, %s4
  %s7 = scalar_select 0, %s6, %s4
  $region1: #{transformer_classifier_forward.25} parent=0
    #allocation3 [shape = 'u8[1024]{0}', space=vmem, size = 0x400, scoped, tag = 'output window, operand 0, single buffered']
    #allocation4 [shape = 's32[1]{0}', space=sflag, size = 0x4, scoped, tag = 'scoped memory for transformer_classifier_forward.25']
    %8 = vsyncpa [#allocation4], 0
    // Predicated region
    $region2: #{transformer_classifier_forward.25} parent=1 // pred_check
      _
    $region3: #{transformer_classifier_forward.25} parent=1 // pred_check_branch
      %10 = sbr.rel (0) target = $region5
    $region4: #{transformer_classifier_forward.25} parent=1 // pred_region
      _
    $region5: #{transformer_classifier_forward.25} parent=1 // pred_fallthru
      _
    // Predicated region
    $region6: #{transformer_classifier_forward.25} parent=1 // pred_check
      _
    $region7: #{transformer_classifier_forward.25} parent=1 // pred_check_branch
      %12 = sbr.rel (0) target = $region9
    $region8: #{transformer_classifier_forward.25} parent=1 // pred_region
      _
    $region9: #{transformer_classifier_forward.25} parent=1 // pred_fallthru
      _
    // Predicated region
    $region10: #{transformer_classifier_forward.25} parent=1 // pred_check
      _
    $region11: #{transformer_classifier_forward.25} parent=1 // pred_check_branch
      %14 = sbr.rel (0) target = $region13
    $region12: #{transformer_classifier_forward.25} parent=1 // pred_region
      _
    $region13: #{transformer_classifier_forward.25} parent=1 // pred_fallthru
      _
    %p16 = scmp.eq.s32.totalorder 0, 0
    // Predicated region
    $region14: #{transformer_classifier_forward.25} parent=1 // pred_check
      %p17 = pneg %p16
    $region15: #{transformer_classifier_forward.25} parent=1 // pred_check_branch
      %19 = sbr.rel (%p17) target = $region17
    $region16: #{transformer_classifier_forward.25} parent=1 // pred_region
      %vm20 = vcmask 25600
      %21 = vst.msk [vmem:[#allocation2] sm:$0x3] %vm20, 0.0
    $region17: #{transformer_classifier_forward.25} parent=1 // pred_fallthru
      _
    %v22 = vld [vmem:[#allocation2] sm:$0x3]
    %v23 = vld [vmem:[%s0] sm:$0x1]
    %v24 = vld [vmem:[%s1] sm:$0xf]
    %v25 = vld [vmem:[%s1 + $0x4] sm:$0xf]
    %v26 = vld [vmem:[%s1 + $0x8] sm:$0xf]
    %v27 = vld [vmem:[%s1 + $0xc] sm:$0xf]
    %v32 = vunpack.c.l.b16 %v24
    %v33 = vunpack.c.l.b16 %v25
    %v34 = vunpack.c.l.b16 %v26
    %v35 = vunpack.c.l.b16 %v27
    %v36 = vpack.c.b16 %v33, %v32
    %v37 = vpack.c.b16 %v35, %v34
    %vm40 = vcmask 261120
    %v42 = vsel %vm40, %v23, 0
    %44 = vmatpush.bf16.msra.mxu0 0
    %45 = vmatpush.bf16.msra.mxu0 0
    %46 = vmatpush.bf16.msra.mxu0 0
    %47 = vmatpush.bf16.msra.mxu0 0
    %48 = vmatpush.bf16.msra.mxu0 0
    %49 = vmatpush.bf16.msra.mxu0 0
    %50 = vmatpush.bf16.msra.mxu0 %v37
    %51 = vmatpush.bf16.msra.mxu0 %v36
    %52 = vmatmul.bf16.gmra.mxu0 %v42
    %v53 = vpop.f32.mrf.mxu0
    %v54 = vadd.f32 0.0, %v53
    %v55 = vpop.f32.mrf.mxu0
    %56 = vdwg.mxu0
    %v57 = vadd.f32 %v22, %v54
    %vm58 = vcmask 25600
    %59 = vst.msk [vmem:[#allocation2] sm:$0x3] %vm58, %v57
    // Predicated region
    $region18: #{transformer_classifier_forward.25} parent=1 // pred_check
      %p60 = pneg %p16
    $region19: #{transformer_classifier_forward.25} parent=1 // pred_check_branch
      %62 = sbr.rel (%p60) target = $region21
    $region20: #{transformer_classifier_forward.25} parent=1 // pred_region
      %v63 = vld [vmem:[#allocation2] sm:$0x3]
      %v64 = vld [vmem:[%s2] sm:$0x1]
      %v66 = vperm.slane %v64, 0
      %v68 = vadd.f32 %v63, %v66
      %69 = vst.msk [vmem:[#allocation3] sm:$0x3] %vm58, %v68
    $region21: #{transformer_classifier_forward.25} parent=1 // pred_fallthru
      _
    // Predicated region
    $region22: #{transformer_classifier_forward.25} parent=1 // pred_check
      _
    $region23: #{transformer_classifier_forward.25} parent=1 // pred_check_branch
      %71 = sbr.rel (0) target = $region25
    $region24: #{transformer_classifier_forward.25} parent=1 // pred_region
      %73 = vsyncadd [#allocation4], 0
      %s75 = sshll.u32 [#allocation3], 4
      %s76 = int_to_ptr.vmem [resolvable:$true] %s75
      %s77 = sshll.u32 %s3, 4
      %s78 = int_to_ptr.hbm [resolvable:$true] %s77
      %80 = dma.vmem_to_hbm [thread:$0]  %s76, 32, %s78, [#allocation4]
    $region25: #{transformer_classifier_forward.25} parent=1 // pred_fallthru
      _
    // Predicated region
    $region26: #{transformer_classifier_forward.25} parent=1 // pred_check
      _
    $region27: #{transformer_classifier_forward.25} parent=1 // pred_check_branch
      %82 = sbr.rel (0) target = $region29
    $region28: #{transformer_classifier_forward.25} parent=1 // pred_region
      %84 = dma.done [#allocation4], 32
    $region29: #{transformer_classifier_forward.25} parent=1 // pred_fallthru
      _
    %85 = vsyncpa [#allocation4], 1

</llo_original>
